<compile_context>
chip_gen: v5e
topology: v5e:2x2
jax: 0.10.0
libtpu: 0.0.40
codegen_flags: <defaults>
</compile_context>

<pallas_src>
import functools
from math import sqrt

import jax
import jax.numpy as jnp
from jax.experimental import pallas as pl
from jax.experimental.pallas import tpu as pltpu


# ----------------------------------------------------------------------------
# Pallas kernel: fused DAC attention for both patch branches
# ----------------------------------------------------------------------------

def _dac_attention_kernel(xps_ref, xpn_ref, wqk_ref, bqk_ref,
                          series_ref, prior_ref, *,
                          n_heads, head_dim, channel, bc):
    """Fused Q/K projection + per-head scaled softmax attention + channel mean.

    xps_ref:    (Bc*L1, M)       patch-size branch tokens (batch*seq flattened)
    xpn_ref:    (Bc*L2, M)       patch-num branch tokens
    wqk_ref:    (M, 2*H*E)       fused [Wq | Wk], pre-transposed (input-major)
    bqk_ref:    (1, 2*H*E)       fused biases
    series_ref: (B, H, L1, L1)   channel-meaned softmax attention (patch-size)
    prior_ref:  (B, H, L2, L2)   channel-meaned softmax attention (patch-num)
    """
    H, E, Bc = n_heads, head_dim, bc
    HE = H * E
    B = Bc // channel
    scale = 1.0 / sqrt(E)

    wqk = wqk_ref[...]            # (M, 2*H*E)
    bqk = bqk_ref[...]            # (1, 2*H*E)

    def branch(x2):
        # x2: (Bc*L, M)  ->  channel-meaned attention maps (B, H, L, L)
        L = x2.shape[0] // Bc

        # Single fused Q/K projection: one MXU matmul covers both projections.
        qk = jnp.dot(x2, wqk, preferred_element_type=jnp.float32) + bqk    # (Bc*L, 2HE)

        # Regroup rows per batch element via leading-axis stacking only
        # (static slices + concat; no reshape that touches the tiled dims).
        qk3 = jnp.stack([qk[b * L:(b + 1) * L, :] for b in range(Bc)], axis=0)  # (Bc,L,2HE)

        # Head-batched layout (Bc*H, L, E): minor-dim slices + leading stack.
        qh = jnp.stack([qk3[:, :, h * E:(h + 1) * E] for h in range(H)], axis=1)
        kh = jnp.stack([qk3[:, :, HE + h * E:HE + (h + 1) * E] for h in range(H)], axis=1)
        qh = qh.reshape(Bc * H, L, E)
        kh = kh.reshape(Bc * H, L, E)

        # One batched score contraction + one softmax for all batches/heads.
        s = jnp.einsum('gle,gse->gls', qh, kh,
                       preferred_element_type=jnp.float32) * scale         # (Bc*H, L, L)
        s = s - jnp.max(s, axis=-1, keepdims=True)
        p = jnp.exp(s)
        attn = p / jnp.sum(p, axis=-1, keepdims=True)
        # TODO(synk): nn.Dropout(p=0.05) of DAC_Structure is identity in eval
        # mode; training-mode dropout is not implemented.

        # Channel mean fused in-kernel (commutes with the repeat/tile upsample
        # done on the reduced maps outside the kernel).
        attn = attn.reshape(B, channel, H, L, L)
        return jnp.mean(attn, axis=1)                                       # (B, H, L, L)

    series_ref[...] = branch(xps_ref[...])
    prior_ref[...] = branch(xpn_ref[...])


# ----------------------------------------------------------------------------
# Wrapper around pallas_call
# ----------------------------------------------------------------------------

def dac_attention(x_ps, x_pn, wq, bq, wk, bk, *, n_heads, channel):
    """Both DAC branches in one pallas_call.

    x_ps: (Bc, L1, M), x_pn: (Bc, L2, M) with Bc = B*channel.
    Returns channel-meaned attention maps: (B, H, L1, L1), (B, H, L2, L2).
    """
    Bc, L1, M = x_ps.shape
    Bc2, L2, _ = x_pn.shape
    assert Bc2 == Bc
    HE = wq.shape[0]
    E = HE // n_heads
    B = Bc // channel

    # Free wrapper-side layout plumbing: fuse + pre-transpose the Q/K weights,
    # flatten batch*seq so the kernel does one big 2-D projection matmul.
    wqk_t = jnp.concatenate([wq, wk], axis=0).T      # (M, 2*H*E)
    bqk = jnp.concatenate([bq, bk], axis=1)          # (1, 2*H*E)
    x_ps2 = x_ps.reshape(Bc * L1, M)
    x_pn2 = x_pn.reshape(Bc * L2, M)

    kern = functools.partial(_dac_attention_kernel,
                             n_heads=n_heads, head_dim=E, channel=channel, bc=Bc)
    return pl.pallas_call(
        kern,
        out_shape=(jax.ShapeDtypeStruct((B, n_heads, L1, L1), jnp.float32),
                   jax.ShapeDtypeStruct((B, n_heads, L2, L2), jnp.float32)),
        grid=(1,),
        in_specs=[
            pl.BlockSpec((Bc * L1, M), lambda i: (0, 0)),
            pl.BlockSpec((Bc * L2, M), lambda i: (0, 0)),
            pl.BlockSpec((M, 2 * HE), lambda i: (0, 0)),
            pl.BlockSpec((1, 2 * HE), lambda i: (0, 0)),
        ],
        out_specs=(
            pl.BlockSpec((B, n_heads, L1, L1), lambda i: (0, 0, 0, 0)),
            pl.BlockSpec((B, n_heads, L2, L2), lambda i: (0, 0, 0, 0)),
        ),
        # Single-step grid: don't shard trivial work across v7x TensorCores.
        compiler_params=pltpu.CompilerParams(dimension_semantics=("arbitrary",)),
    )(x_ps2, x_pn2, wqk_t, bqk)


# ----------------------------------------------------------------------------
# AttentionLayer forward (DCdetector), inner attention = DAC_Structure (eval)
# ----------------------------------------------------------------------------

def attention_layer_forward(params, x_patch_size, x_patch_num, x_ori, patch_index,
                            *, n_heads, patch_size_list, channel, win_size):
    mean_ps, mean_pn = dac_attention(
        x_patch_size, x_patch_num,
        params["wq"], params["bq"], params["wk"], params["bk"],
        n_heads=n_heads, channel=channel)

    # TODO(synk): the reference module also computes value_proj(x_ori) (and
    # defines out_proj), but neither feeds the returned (series, prior); the
    # dead value-projection pallas_call was removed per the perf review.

    # DAC_Structure upsampling on the already channel-meaned maps (the channel
    # mean commutes with the einops repeat / torch tile).
    p = patch_size_list[patch_index]
    rep = win_size // p
    series = jnp.repeat(jnp.repeat(mean_ps, p, axis=2), p, axis=3)   # (B, H, win, win)
    prior = jnp.tile(mean_pn, (1, 1, rep, rep))                      # (B, H, win, win)
    return series, prior


# ----------------------------------------------------------------------------
# Pure-JAX reference for verification (mirrors the PyTorch op order)
# ----------------------------------------------------------------------------

def reference_forward(params, x_patch_size, x_patch_num, x_ori, patch_index,
                      *, n_heads, patch_size_list, channel, win_size):
    def lin(x, w, b):
        return x @ w.T + b[0]

    def attn(x):
        Bc, L, _ = x.shape
        HE = params["wq"].shape[0]
        E = HE // n_heads
        q = lin(x, params["wq"], params["bq"]).reshape(Bc, L, n_heads, E)
        k = lin(x, params["wk"], params["bk"]).reshape(Bc, L, n_heads, E)
        s = jnp.einsum("blhe,bshe->bhls", q, k) * (1.0 / sqrt(E))
        return jax.nn.softmax(s, axis=-1)

    series_ps = attn(x_patch_size)
    series_pn = attn(x_patch_num)
    p = patch_size_list[patch_index]
    rep = win_size // p
    series = jnp.repeat(jnp.repeat(series_ps, p, axis=2), p, axis=3)
    prior = jnp.tile(series_pn, (1, 1, rep, rep))
    B = series.shape[0] // channel
    series = series.reshape(B, channel, n_heads, win_size, win_size).mean(axis=1)
    prior = prior.reshape(B, channel, n_heads, win_size, win_size).mean(axis=1)
    return series, prior


# ----------------------------------------------------------------------------
# Main
# ----------------------------------------------------------------------------

if __name__ == "__main__":
    # Small, module-consistent config.
    d_model = 32
    n_heads = 4
    d_keys = d_model // n_heads          # 8
    win_size = 16
    patch_size_list = [4]
    patch_index = 0
    channel = 2
    batch = 2
    patch_num = win_size // patch_size_list[patch_index]   # 4

    key = jax.random.PRNGKey(0)
    keys = jax.random.split(key, 12)

    def init_linear(kw, kb, out_f, in_f):
        bound = 1.0 / sqrt(in_f)
        w = jax.random.uniform(kw, (out_f, in_f), jnp.float32, -bound, bound)
        b = jax.random.uniform(kb, (1, out_f), jnp.float32, -bound, bound)
        return w, b

    wq, bq = init_linear(keys[0], keys[1], d_keys * n_heads, d_model)   # patch_query_proj
    wk, bk = init_linear(keys[2], keys[3], d_keys * n_heads, d_model)   # patch_key_proj
    wv, bv = init_linear(keys[4], keys[5], d_keys * n_heads, d_model)   # value_proj (unused)
    wo, bo = init_linear(keys[6], keys[7], d_model, d_keys * n_heads)   # out_proj (unused)

    params = dict(wq=wq, bq=bq, wk=wk, bk=bk, wv=wv, bv=bv, wo=wo, bo=bo)

    # DCdetector shapes: x_patch_size (B*channel, patch_num, d_model),
    #                    x_patch_num  (B*channel, patch_size, d_model),
    #                    x_ori        (B, win_size, d_model)
    x_patch_size = jax.random.normal(keys[8], (batch * channel, patch_num, d_model), jnp.float32)
    x_patch_num = jax.random.normal(keys[9], (batch * channel, patch_size_list[patch_index], d_model), jnp.float32)
    x_ori = jax.random.normal(keys[10], (batch, win_size, d_model), jnp.float32)

    series, prior = attention_layer_forward(
        params, x_patch_size, x_patch_num, x_ori, patch_index,
        n_heads=n_heads, patch_size_list=patch_size_list,
        channel=channel, win_size=win_size)
    jax.block_until_ready((series, prior))

    series_ref, prior_ref = reference_forward(
        params, x_patch_size, x_patch_num, x_ori, patch_index,
        n_heads=n_heads, patch_size_list=patch_size_list,
        channel=channel, win_size=win_size)

    assert series.shape == (batch, n_heads, win_size, win_size)
    assert prior.shape == (batch, n_heads, win_size, win_size)
    assert jnp.allclose(series, series_ref, atol=1e-5, rtol=1e-5)
    assert jnp.allclose(prior, prior_ref, atol=1e-5, rtol=1e-5)

    print("KERNEL_OK")
</pallas_src>

<mosaic_0001>
module attributes {stable_mosaic.version = 11 : i64} {
  func.func @_dac_attention_kernel(%arg0: i32, %arg1: memref<16x32xf32, #tpu.memory_space<vmem>>, %arg2: memref<16x32xf32, #tpu.memory_space<vmem>>, %arg3: memref<32x64xf32, #tpu.memory_space<vmem>>, %arg4: memref<1x64xf32, #tpu.memory_space<vmem>>, %arg5: memref<2x4x4x4xf32, #tpu.memory_space<vmem>>, %arg6: memref<2x4x4x4xf32, #tpu.memory_space<vmem>>) attributes {dimension_semantics = [#tpu.dimension_semantics<arbitrary>], iteration_bounds = array<i64: 1>, scalar_prefetch = 0 : i64, scratch_operands = 0 : i64, tpu.core_type = #tpu.core_type<tc>, window_params = [{pipeline_mode = #tpu.pipeline_mode<synchronous>, transform_indices = @transform_0, window_bounds = array<i64: 16, 32>}, {pipeline_mode = #tpu.pipeline_mode<synchronous>, transform_indices = @transform_1, window_bounds = array<i64: 16, 32>}, {pipeline_mode = #tpu.pipeline_mode<synchronous>, transform_indices = @transform_2, window_bounds = array<i64: 32, 64>}, {pipeline_mode = #tpu.pipeline_mode<synchronous>, transform_indices = @transform_3, window_bounds = array<i64: 1, 64>}, {pipeline_mode = #tpu.pipeline_mode<synchronous>, transform_indices = @transform_4, window_bounds = array<i64: 2, 4, 4, 4>}, {pipeline_mode = #tpu.pipeline_mode<synchronous>, transform_indices = @transform_5, window_bounds = array<i64: 2, 4, 4, 4>}]} {
    %c0 = arith.constant 0 : index
    %c0_0 = arith.constant 0 : index
    %0 = vector.load %arg3[%c0, %c0_0] : memref<32x64xf32, #tpu.memory_space<vmem>>, vector<32x64xf32>
    %c0_1 = arith.constant 0 : index
    %c0_2 = arith.constant 0 : index
    %1 = vector.load %arg4[%c0_1, %c0_2] : memref<1x64xf32, #tpu.memory_space<vmem>>, vector<1x64xf32>
    %c0_3 = arith.constant 0 : index
    %c0_4 = arith.constant 0 : index
    %2 = vector.load %arg1[%c0_3, %c0_4] : memref<16x32xf32, #tpu.memory_space<vmem>>, vector<16x32xf32>
    %cst = arith.constant dense<0.000000e+00> : vector<16x64xf32>
    %3 = tpu.matmul %2, %0, %cst {dimension_numbers = #tpu.dot_dimension_numbers<[1], [0], [0], [1], [0, 0, 1, 1], [], []>} : vector<16x32xf32>, vector<32x64xf32>, vector<16x64xf32> -> vector<16x64xf32>
    %4 = vector.broadcast %1 : vector<1x64xf32> to vector<16x64xf32>
    %5 = arith.addf %3, %4 : vector<16x64xf32>
    %6 = vector.extract_strided_slice %5 {offsets = [0, 0], sizes = [4, 64], strides = [1, 1]} : vector<16x64xf32> to vector<4x64xf32>
    %7 = vector.extract_strided_slice %5 {offsets = [4, 0], sizes = [4, 64], strides = [1, 1]} : vector<16x64xf32> to vector<4x64xf32>
    %8 = vector.extract_strided_slice %5 {offsets = [8, 0], sizes = [4, 64], strides = [1, 1]} : vector<16x64xf32> to vector<4x64xf32>
    %9 = vector.extract_strided_slice %5 {offsets = [12, 0], sizes = [4, 64], strides = [1, 1]} : vector<16x64xf32> to vector<4x64xf32>
    %10 = vector.shape_cast %6 : vector<4x64xf32> to vector<1x4x64xf32>
    %11 = vector.shape_cast %7 : vector<4x64xf32> to vector<1x4x64xf32>
    %12 = vector.shape_cast %8 : vector<4x64xf32> to vector<1x4x64xf32>
    %13 = vector.shape_cast %9 : vector<4x64xf32> to vector<1x4x64xf32>
    %14 = tpu.concatenate %10, %11, %12, %13 in 0 : vector<1x4x64xf32>, vector<1x4x64xf32>, vector<1x4x64xf32>, vector<1x4x64xf32> -> vector<4x4x64xf32>
    %15 = vector.extract_strided_slice %14 {offsets = [0, 0, 0], sizes = [4, 4, 8], strides = [1, 1, 1]} : vector<4x4x64xf32> to vector<4x4x8xf32>
    %16 = vector.extract_strided_slice %14 {offsets = [0, 0, 8], sizes = [4, 4, 8], strides = [1, 1, 1]} : vector<4x4x64xf32> to vector<4x4x8xf32>
    %17 = vector.extract_strided_slice %14 {offsets = [0, 0, 16], sizes = [4, 4, 8], strides = [1, 1, 1]} : vector<4x4x64xf32> to vector<4x4x8xf32>
    %18 = vector.extract_strided_slice %14 {offsets = [0, 0, 24], sizes = [4, 4, 8], strides = [1, 1, 1]} : vector<4x4x64xf32> to vector<4x4x8xf32>
    %19 = vector.shape_cast %15 : vector<4x4x8xf32> to vector<4x1x4x8xf32>
    %20 = vector.shape_cast %16 : vector<4x4x8xf32> to vector<4x1x4x8xf32>
    %21 = vector.shape_cast %17 : vector<4x4x8xf32> to vector<4x1x4x8xf32>
    %22 = vector.shape_cast %18 : vector<4x4x8xf32> to vector<4x1x4x8xf32>
    %23 = tpu.concatenate %19, %20, %21, %22 in 1 : vector<4x1x4x8xf32>, vector<4x1x4x8xf32>, vector<4x1x4x8xf32>, vector<4x1x4x8xf32> -> vector<4x4x4x8xf32>
    %24 = vector.extract_strided_slice %14 {offsets = [0, 0, 32], sizes = [4, 4, 8], strides = [1, 1, 1]} : vector<4x4x64xf32> to vector<4x4x8xf32>
    %25 = vector.extract_strided_slice %14 {offsets = [0, 0, 40], sizes = [4, 4, 8], strides = [1, 1, 1]} : vector<4x4x64xf32> to vector<4x4x8xf32>
    %26 = vector.extract_strided_slice %14 {offsets = [0, 0, 48], sizes = [4, 4, 8], strides = [1, 1, 1]} : vector<4x4x64xf32> to vector<4x4x8xf32>
    %27 = vector.extract_strided_slice %14 {offsets = [0, 0, 56], sizes = [4, 4, 8], strides = [1, 1, 1]} : vector<4x4x64xf32> to vector<4x4x8xf32>
    %28 = vector.shape_cast %24 : vector<4x4x8xf32> to vector<4x1x4x8xf32>
    %29 = vector.shape_cast %25 : vector<4x4x8xf32> to vector<4x1x4x8xf32>
    %30 = vector.shape_cast %26 : vector<4x4x8xf32> to vector<4x1x4x8xf32>
    %31 = vector.shape_cast %27 : vector<4x4x8xf32> to vector<4x1x4x8xf32>
    %32 = tpu.concatenate %28, %29, %30, %31 in 1 : vector<4x1x4x8xf32>, vector<4x1x4x8xf32>, vector<4x1x4x8xf32>, vector<4x1x4x8xf32> -> vector<4x4x4x8xf32>
    %33 = vector.shape_cast %23 : vector<4x4x4x8xf32> to vector<16x4x8xf32>
    %34 = vector.shape_cast %32 : vector<4x4x4x8xf32> to vector<16x4x8xf32>
    "tpu.trace_start"() <{level = 10 : i32, message = "gle,gse->gls"}> : () -> ()
    %cst_5 = arith.constant dense<0.000000e+00> : vector<16x4x4xf32>
    %35 = tpu.matmul %33, %34, %cst_5 {dimension_numbers = #tpu.dot_dimension_numbers<[2], [2], [1], [1], [0, 0, 0, 1, 1, 1], [0], [0]>} : vector<16x4x8xf32>, vector<16x4x8xf32>, vector<16x4x4xf32> -> vector<16x4x4xf32>
    "tpu.trace_stop"() : () -> ()
    %cst_6 = arith.constant 0.353553385 : f32
    %36 = vector.broadcast %cst_6 : f32 to vector<16x4x4xf32>
    %37 = arith.mulf %35, %36 : vector<16x4x4xf32>
    %cst_7 = arith.constant dense<0xFF800000> : vector<16x4xf32>
    %38 = vector.multi_reduction <maximumf>, %37, %cst_7 [2] : vector<16x4x4xf32> to vector<16x4xf32>
    %39 = vector.shape_cast %38 : vector<16x4xf32> to vector<16x4x1xf32>
    %40 = vector.broadcast %39 : vector<16x4x1xf32> to vector<16x4x4xf32>
    %41 = arith.subf %37, %40 : vector<16x4x4xf32>
    %42 = math.exp %41 : vector<16x4x4xf32>
    %cst_8 = arith.constant dense<0.000000e+00> : vector<16x4xf32>
    %43 = vector.multi_reduction <add>, %42, %cst_8 [2] : vector<16x4x4xf32> to vector<16x4xf32>
    %44 = vector.shape_cast %43 : vector<16x4xf32> to vector<16x4x1xf32>
    %45 = vector.broadcast %44 : vector<16x4x1xf32> to vector<16x4x4xf32>
    %46 = arith.divf %42, %45 : vector<16x4x4xf32>
    %47 = vector.shape_cast %46 : vector<16x4x4xf32> to vector<2x2x4x4x4xf32>
    %cst_9 = arith.constant dense<0.000000e+00> : vector<2x4x4x4xf32>
    %48 = vector.multi_reduction <add>, %47, %cst_9 [1] : vector<2x2x4x4x4xf32> to vector<2x4x4x4xf32>
    %cst_10 = arith.constant 2.000000e+00 : f32
    %49 = vector.broadcast %cst_10 : f32 to vector<2x4x4x4xf32>
    %50 = arith.divf %48, %49 : vector<2x4x4x4xf32>
    %c0_11 = arith.constant 0 : index
    %c0_12 = arith.constant 0 : index
    %c0_13 = arith.constant 0 : index
    %c0_14 = arith.constant 0 : index
    %51 = vector.load %arg5[%c0_11, %c0_12, %c0_13, %c0_14] : memref<2x4x4x4xf32, #tpu.memory_space<vmem>>, vector<2x4x4x4xf32>
    tpu.vector_store %arg5[%c0_11, %c0_12, %c0_13, %c0_14], %50 {strides = array<i32>} : memref<2x4x4x4xf32, #tpu.memory_space<vmem>>, vector<2x4x4x4xf32>,
    %c0_15 = arith.constant 0 : index
    %c0_16 = arith.constant 0 : index
    %52 = vector.load %arg2[%c0_15, %c0_16] : memref<16x32xf32, #tpu.memory_space<vmem>>, vector<16x32xf32>
    %cst_17 = arith.constant dense<0.000000e+00> : vector<16x64xf32>
    %53 = tpu.matmul %52, %0, %cst_17 {dimension_numbers = #tpu.dot_dimension_numbers<[1], [0], [0], [1], [0, 0, 1, 1], [], []>} : vector<16x32xf32>, vector<32x64xf32>, vector<16x64xf32> -> vector<16x64xf32>
    %54 = vector.broadcast %1 : vector<1x64xf32> to vector<16x64xf32>
    %55 = arith.addf %53, %54 : vector<16x64xf32>
    %56 = vector.extract_strided_slice %55 {offsets = [0, 0], sizes = [4, 64], strides = [1, 1]} : vector<16x64xf32> to vector<4x64xf32>
    %57 = vector.extract_strided_slice %55 {offsets = [4, 0], sizes = [4, 64], strides = [1, 1]} : vector<16x64xf32> to vector<4x64xf32>
    %58 = vector.extract_strided_slice %55 {offsets = [8, 0], sizes = [4, 64], strides = [1, 1]} : vector<16x64xf32> to vector<4x64xf32>
    %59 = vector.extract_strided_slice %55 {offsets = [12, 0], sizes = [4, 64], strides = [1, 1]} : vector<16x64xf32> to vector<4x64xf32>
    %60 = vector.shape_cast %56 : vector<4x64xf32> to vector<1x4x64xf32>
    %61 = vector.shape_cast %57 : vector<4x64xf32> to vector<1x4x64xf32>
    %62 = vector.shape_cast %58 : vector<4x64xf32> to vector<1x4x64xf32>
    %63 = vector.shape_cast %59 : vector<4x64xf32> to vector<1x4x64xf32>
    %64 = tpu.concatenate %60, %61, %62, %63 in 0 : vector<1x4x64xf32>, vector<1x4x64xf32>, vector<1x4x64xf32>, vector<1x4x64xf32> -> vector<4x4x64xf32>
    %65 = vector.extract_strided_slice %64 {offsets = [0, 0, 0], sizes = [4, 4, 8], strides = [1, 1, 1]} : vector<4x4x64xf32> to vector<4x4x8xf32>
    %66 = vector.extract_strided_slice %64 {offsets = [0, 0, 8], sizes = [4, 4, 8], strides = [1, 1, 1]} : vector<4x4x64xf32> to vector<4x4x8xf32>
    %67 = vector.extract_strided_slice %64 {offsets = [0, 0, 16], sizes = [4, 4, 8], strides = [1, 1, 1]} : vector<4x4x64xf32> to vector<4x4x8xf32>
    %68 = vector.extract_strided_slice %64 {offsets = [0, 0, 24], sizes = [4, 4, 8], strides = [1, 1, 1]} : vector<4x4x64xf32> to vector<4x4x8xf32>
    %69 = vector.shape_cast %65 : vector<4x4x8xf32> to vector<4x1x4x8xf32>
    %70 = vector.shape_cast %66 : vector<4x4x8xf32> to vector<4x1x4x8xf32>
    %71 = vector.shape_cast %67 : vector<4x4x8xf32> to vector<4x1x4x8xf32>
    %72 = vector.shape_cast %68 : vector<4x4x8xf32> to vector<4x1x4x8xf32>
    %73 = tpu.concatenate %69, %70, %71, %72 in 1 : vector<4x1x4x8xf32>, vector<4x1x4x8xf32>, vector<4x1x4x8xf32>, vector<4x1x4x8xf32> -> vector<4x4x4x8xf32>
    %74 = vector.extract_strided_slice %64 {offsets = [0, 0, 32], sizes = [4, 4, 8], strides = [1, 1, 1]} : vector<4x4x64xf32> to vector<4x4x8xf32>
    %75 = vector.extract_strided_slice %64 {offsets = [0, 0, 40], sizes = [4, 4, 8], strides = [1, 1, 1]} : vector<4x4x64xf32> to vector<4x4x8xf32>
    %76 = vector.extract_strided_slice %64 {offsets = [0, 0, 48], sizes = [4, 4, 8], strides = [1, 1, 1]} : vector<4x4x64xf32> to vector<4x4x8xf32>
    %77 = vector.extract_strided_slice %64 {offsets = [0, 0, 56], sizes = [4, 4, 8], strides = [1, 1, 1]} : vector<4x4x64xf32> to vector<4x4x8xf32>
    %78 = vector.shape_cast %74 : vector<4x4x8xf32> to vector<4x1x4x8xf32>
    %79 = vector.shape_cast %75 : vector<4x4x8xf32> to vector<4x1x4x8xf32>
    %80 = vector.shape_cast %76 : vector<4x4x8xf32> to vector<4x1x4x8xf32>
    %81 = vector.shape_cast %77 : vector<4x4x8xf32> to vector<4x1x4x8xf32>
    %82 = tpu.concatenate %78, %79, %80, %81 in 1 : vector<4x1x4x8xf32>, vector<4x1x4x8xf32>, vector<4x1x4x8xf32>, vector<4x1x4x8xf32> -> vector<4x4x4x8xf32>
    %83 = vector.shape_cast %73 : vector<4x4x4x8xf32> to vector<16x4x8xf32>
    %84 = vector.shape_cast %82 : vector<4x4x4x8xf32> to vector<16x4x8xf32>
    "tpu.trace_start"() <{level = 10 : i32, message = "gle,gse->gls"}> : () -> ()
    %cst_18 = arith.constant dense<0.000000e+00> : vector<16x4x4xf32>
    %85 = tpu.matmul %83, %84, %cst_18 {dimension_numbers = #tpu.dot_dimension_numbers<[2], [2], [1], [1], [0, 0, 0, 1, 1, 1], [0], [0]>} : vector<16x4x8xf32>, vector<16x4x8xf32>, vector<16x4x4xf32> -> vector<16x4x4xf32>
    "tpu.trace_stop"() : () -> ()
    %cst_19 = arith.constant 0.353553385 : f32
    %86 = vector.broadcast %cst_19 : f32 to vector<16x4x4xf32>
    %87 = arith.mulf %85, %86 : vector<16x4x4xf32>
    %cst_20 = arith.constant dense<0xFF800000> : vector<16x4xf32>
    %88 = vector.multi_reduction <maximumf>, %87, %cst_20 [2] : vector<16x4x4xf32> to vector<16x4xf32>
    %89 = vector.shape_cast %88 : vector<16x4xf32> to vector<16x4x1xf32>
    %90 = vector.broadcast %89 : vector<16x4x1xf32> to vector<16x4x4xf32>
    %91 = arith.subf %87, %90 : vector<16x4x4xf32>
    %92 = math.exp %91 : vector<16x4x4xf32>
    %cst_21 = arith.constant dense<0.000000e+00> : vector<16x4xf32>
    %93 = vector.multi_reduction <add>, %92, %cst_21 [2] : vector<16x4x4xf32> to vector<16x4xf32>
    %94 = vector.shape_cast %93 : vector<16x4xf32> to vector<16x4x1xf32>
    %95 = vector.broadcast %94 : vector<16x4x1xf32> to vector<16x4x4xf32>
    %96 = arith.divf %92, %95 : vector<16x4x4xf32>
    %97 = vector.shape_cast %96 : vector<16x4x4xf32> to vector<2x2x4x4x4xf32>
    %cst_22 = arith.constant dense<0.000000e+00> : vector<2x4x4x4xf32>
    %98 = vector.multi_reduction <add>, %97, %cst_22 [1] : vector<2x2x4x4x4xf32> to vector<2x4x4x4xf32>
    %cst_23 = arith.constant 2.000000e+00 : f32
    %99 = vector.broadcast %cst_23 : f32 to vector<2x4x4x4xf32>
    %100 = arith.divf %98, %99 : vector<2x4x4x4xf32>
    %c0_24 = arith.constant 0 : index
    %c0_25 = arith.constant 0 : index
    %c0_26 = arith.constant 0 : index
    %c0_27 = arith.constant 0 : index
    %101 = vector.load %arg6[%c0_24, %c0_25, %c0_26, %c0_27] : memref<2x4x4x4xf32, #tpu.memory_space<vmem>>, vector<2x4x4x4xf32>
    tpu.vector_store %arg6[%c0_24, %c0_25, %c0_26, %c0_27], %100 {strides = array<i32>} : memref<2x4x4x4xf32, #tpu.memory_space<vmem>>, vector<2x4x4x4xf32>,
    return
  }
  func.func @transform_0(%arg0: i32) -> (i32, i32) {
    %c0_i32 = arith.constant 0 : i32
    %c0_i32_0 = arith.constant 0 : i32
    %c0_i32_1 = arith.constant 0 : i32
    return %c0_i32, %c0_i32_0 : i32, i32
  }
  func.func @transform_1(%arg0: i32) -> (i32, i32) {
    %c0_i32 = arith.constant 0 : i32
    %c0_i32_0 = arith.constant 0 : i32
    %c0_i32_1 = arith.constant 0 : i32
    return %c0_i32, %c0_i32_0 : i32, i32
  }
  func.func @transform_2(%arg0: i32) -> (i32, i32) {
    %c0_i32 = arith.constant 0 : i32
    %c0_i32_0 = arith.constant 0 : i32
    %c0_i32_1 = arith.constant 0 : i32
    return %c0_i32, %c0_i32_0 : i32, i32
  }
  func.func @transform_3(%arg0: i32) -> (i32, i32) {
    %c0_i32 = arith.constant 0 : i32
    %c0_i32_0 = arith.constant 0 : i32
    %c0_i32_1 = arith.constant 0 : i32
    return %c0_i32, %c0_i32_0 : i32, i32
  }
  func.func @transform_4(%arg0: i32) -> (i32, i32, i32, i32) {
    %c0_i32 = arith.constant 0 : i32
    %c0_i32_0 = arith.constant 0 : i32
    %c0_i32_1 = arith.constant 0 : i32
    %c0_i32_2 = arith.constant 0 : i32
    %c0_i32_3 = arith.constant 0 : i32
    return %c0_i32, %c0_i32_0, %c0_i32_1, %c0_i32_2 : i32, i32, i32, i32
  }
  func.func @transform_5(%arg0: i32) -> (i32, i32, i32, i32) {
    %c0_i32 = arith.constant 0 : i32
    %c0_i32_0 = arith.constant 0 : i32
    %c0_i32_1 = arith.constant 0 : i32
    %c0_i32_2 = arith.constant 0 : i32
    %c0_i32_3 = arith.constant 0 : i32
    return %c0_i32, %c0_i32_0, %c0_i32_1, %c0_i32_2 : i32, i32, i32, i32
  }
}

</mosaic_0001>

<llo_original>
// kernel: tpu_custom_call.1
$region0: #{tpu_custom_call.1}
  #allocation0 [shape = 'u32[]', space=smem, size = 0x4, offset = 0x4, fixed_abs, tag = 'smem constant byte address 0x4 - core index']
  #allocation1 [shape = 'u32[72,128]{1,0:T(1,128)}', space=vmem, size = 0x9000, scoped, tag = 'internal scratch']
  %s0 = inlined_call_operand.hbm [shape: f32[16,32], index: 0, kind: input, shape index: {}]
  %s1 = inlined_call_operand.hbm [shape: f32[16,32], index: 1, kind: input, shape index: {}]
  %s2 = inlined_call_operand.hbm [shape: f32[32,64], index: 2, kind: input, shape index: {}]
  %s3 = inlined_call_operand.vmem [shape: f32[1,64], index: 3, kind: input, shape index: {}]
  %s4 = inlined_call_operand.hbm [shape: f32[2,4,4,4], index: 4, kind: output, shape index: {0}]
  %s5 = inlined_call_operand.hbm [shape: f32[2,4,4,4], index: 5, kind: output, shape index: {1}]
  %6 = xla_tuple %s4, %s5
  %s7 = sld [smem:[#allocation0]]
  $region46: #{tpu_custom_call.1} parent=0
    _
  %s9 = ssub.s32 1, %s7
  %s10 = scalar_select 0, %s9, %s7
  $region1: #{tpu_custom_call.1} parent=0
    #allocation2 [shape = 'u8[8192]{0}', space=vmem, size = 0x2000, scoped, tag = 'input window, operand 0, single buffered']
    #allocation3 [shape = 's32[1]{0}', space=sflag, size = 0x4, scoped, tag = 'scoped memory for tpu_custom_call.1']
    #allocation4 [shape = 's32[1]{0}', space=sflag, size = 0x4, scoped, tag = 'scoped memory for tpu_custom_call.1']
    #allocation5 [shape = 'u8[8192]{0}', space=vmem, size = 0x2000, scoped, tag = 'input window, operand 1, single buffered']
    #allocation6 [shape = 's32[1]{0}', space=sflag, size = 0x4, scoped, tag = 'scoped memory for tpu_custom_call.1']
    #allocation7 [shape = 'u8[16384]{0}', space=vmem, size = 0x4000, scoped, tag = 'input window, operand 2, single buffered']
    #allocation8 [shape = 'u8[16384]{0}', space=vmem, size = 0x4000, scoped, tag = 'output window, operand 0, single buffered']
    #allocation9 [shape = 'u8[16384]{0}', space=vmem, size = 0x4000, scoped, tag = 'output window, operand 1, single buffered']
    #allocation10 [shape = 's32[1]{0}', space=sflag, size = 0x4, scoped, tag = 'scoped memory for tpu_custom_call.1']
    %11 = vsyncpa [#allocation3], 0
    %12 = vsyncpa [#allocation6], 0
    %13 = vsyncpa [#allocation4], 0
    %14 = vsyncpa [#allocation10], 0
    // Predicated region
    $region2: #{tpu_custom_call.1} parent=1 // pred_check
      _
    $region3: #{tpu_custom_call.1} parent=1 // pred_check_branch
      %16 = sbr.rel (0) target = $region5
    $region4: #{tpu_custom_call.1} parent=1 // pred_region
      %18 = vsyncadd [#allocation3], 0
      %s19 = sshll.u32 %s0, 4
      %s20 = int_to_ptr.hbm [resolvable:$true] %s19
      %s21 = sshll.u32 [#allocation2], 4
      %s22 = int_to_ptr.vmem [resolvable:$true] %s21
      %27 = dma.hbm_to_vmem [thread:$0]  %s20, 256, %s22, [#allocation3], 128, 128, 8
    $region5: #{tpu_custom_call.1} parent=1 // pred_fallthru
      _
    // Predicated region
    $region6: #{tpu_custom_call.1} parent=1 // pred_check
      _
    $region7: #{tpu_custom_call.1} parent=1 // pred_check_branch
      %29 = sbr.rel (0) target = $region9
    $region8: #{tpu_custom_call.1} parent=1 // pred_region
      %31 = vsyncadd [#allocation6], 0
      %s32 = sshll.u32 %s1, 4
      %s33 = int_to_ptr.hbm [resolvable:$true] %s32
      %s34 = sshll.u32 [#allocation5], 4
      %s35 = int_to_ptr.vmem [resolvable:$true] %s34
      %40 = dma.hbm_to_vmem [thread:$0]  %s33, 256, %s35, [#allocation6], 128, 128, 8
    $region9: #{tpu_custom_call.1} parent=1 // pred_fallthru
      _
    // Predicated region
    $region10: #{tpu_custom_call.1} parent=1 // pred_check
      _
    $region11: #{tpu_custom_call.1} parent=1 // pred_check_branch
      %42 = sbr.rel (0) target = $region13
    $region12: #{tpu_custom_call.1} parent=1 // pred_region
      %44 = vsyncadd [#allocation6], 0
      %s45 = sshll.u32 %s2, 4
      %s46 = int_to_ptr.hbm [resolvable:$true] %s45
      %s47 = sshll.u32 [#allocation7], 4
      %s48 = int_to_ptr.vmem [resolvable:$true] %s47
      %53 = dma.hbm_to_vmem [thread:$0]  %s46, 512, %s48, [#allocation6], 128, 128, 8
    $region13: #{tpu_custom_call.1} parent=1 // pred_fallthru
      _
    // Predicated region
    $region14: #{tpu_custom_call.1} parent=1 // pred_check
      _
    $region15: #{tpu_custom_call.1} parent=1 // pred_check_branch
      %55 = sbr.rel (0) target = $region17
    $region16: #{tpu_custom_call.1} parent=1 // pred_region
      _
    $region17: #{tpu_custom_call.1} parent=1 // pred_fallthru
      _
    // Predicated region
    $region18: #{tpu_custom_call.1} parent=1 // pred_check
      _
    $region19: #{tpu_custom_call.1} parent=1 // pred_check_branch
      %57 = sbr.rel (0) target = $region21
    $region20: #{tpu_custom_call.1} parent=1 // pred_region
      %59 = dma.done [#allocation3], 256
    $region21: #{tpu_custom_call.1} parent=1 // pred_fallthru
      _
    // Predicated region
    $region22: #{tpu_custom_call.1} parent=1 // pred_check
      _
    $region23: #{tpu_custom_call.1} parent=1 // pred_check_branch
      %61 = sbr.rel (0) target = $region25
    $region24: #{tpu_custom_call.1} parent=1 // pred_region
      %63 = dma.done [#allocation6], 256
    $region25: #{tpu_custom_call.1} parent=1 // pred_fallthru
      _
    // Predicated region
    $region26: #{tpu_custom_call.1} parent=1 // pred_check
      _
    $region27: #{tpu_custom_call.1} parent=1 // pred_check_branch
      %65 = sbr.rel (0) target = $region29
    $region28: #{tpu_custom_call.1} parent=1 // pred_region
      %67 = dma.done [#allocation6], 512
    $region29: #{tpu_custom_call.1} parent=1 // pred_fallthru
      _
    %v68 = vld [vmem:[#allocation7] sm:$0xff]
    %v69 = vld [vmem:[#allocation7 + $0x8] sm:$0xff]
    %v70 = vld [vmem:[#allocation7 + $0x10] sm:$0xff]
    %v71 = vld [vmem:[#allocation7 + $0x18] sm:$0xff]
    %v72 = vld [vmem:[%s3] sm:$0x1]
    %v73 = vld [vmem:[#allocation2] sm:$0xff]
    %v74 = vld [vmem:[#allocation2 + $0x8] sm:$0xff]
    %v76 = vperm.slane %v72, 0
    %vm78 = vcmask 261120
    %v80 = vsel %vm78, %v73, 0
    %v83 = vsel %vm78, %v74, 0
    %85 = vmatpush.msra.mxu0 0.0
    %86 = vmatpush.msra.mxu0 0.0
    %87 = vmatpush.msra.mxu0 0.0
    %88 = vmatpush.msra.mxu0 0.0
    %89 = vmatpush.msra.mxu0 0.0
    %90 = vmatpush.msra.mxu0 0.0
    %91 = vmatpush.msra.mxu0 0.0
    %92 = vmatpush.msra.mxu0 0.0
    %93 = vmatpush.msra.mxu0 0.0
    %94 = vmatpush.msra.mxu0 0.0
    %95 = vmatpush.msra.mxu0 0.0
    %96 = vmatpush.msra.mxu0 0.0
    %97 = vmatpush.msra.mxu0 %v71
    %98 = vmatpush.msra.mxu0 %v70
    %99 = vmatpush.msra.mxu0 %v69
    %100 = vmatpush.msra.mxu0 %v68
    %101 = vmatmul.f32.gmra.mxu0 %v80
    %v102 = vpop.f32.mrf.mxu0
    %v103 = vadd.f32 %v76, %v102
    %104 = vmatmul.f32.gmra.mxu0 %v83
    %v105 = vpop.f32.mrf.mxu0
    %v106 = vadd.f32 %v76, %v105
    %107 = vdwg.mxu0
    %v109 = vrot.slane %v103, 4
    %v111 = vrot.slane %v106, 4
    %112 = vrot.lane.b32.xlu0 %v103, 120
    %v113 = vpop.permute.xlu0 %112
    %114 = vrot.lane.b32.xlu0 %v109, 120
    %v115 = vpop.permute.xlu0 %114
    %116 = vrot.lane.b32.xlu0 %v106, 120
    %v117 = vpop.permute.xlu0 %116
    %118 = vrot.lane.b32.xlu0 %v111, 120
    %v119 = vpop.permute.xlu0 %118
    %120 = vrot.lane.b32.xlu0 %v103, 112
    %v121 = vpop.permute.xlu0 %120
    %122 = vrot.lane.b32.xlu0 %v109, 112
    %v123 = vpop.permute.xlu0 %122
    %124 = vrot.lane.b32.xlu0 %v106, 112
    %v125 = vpop.permute.xlu0 %124
    %126 = vrot.lane.b32.xlu0 %v111, 112
    %v127 = vpop.permute.xlu0 %126
    %128 = vrot.lane.b32.xlu0 %v103, 104
    %v129 = vpop.permute.xlu0 %128
    %130 = vrot.lane.b32.xlu0 %v109, 104
    %v131 = vpop.permute.xlu0 %130
    %132 = vrot.lane.b32.xlu0 %v106, 104
    %v133 = vpop.permute.xlu0 %132
    %134 = vrot.lane.b32.xlu0 %v111, 104
    %v135 = vpop.permute.xlu0 %134
    %136 = vrot.lane.b32.xlu0 %v103, 96
    %v137 = vpop.permute.xlu0 %136
    %vm138 = vcmask 64512
    %v139 = vsel %vm138, %v103, 0
    %v141 = vsel %vm138, %v137, 0
    %143 = vmatpush.xpose.msra.mxu0 0.0
    %144 = vmatpush.xpose.msra.mxu0 0.0
    %145 = vmatpush.xpose.msra.mxu0 0.0
    %146 = vmatpush.xpose.msra.mxu0 0.0
    %147 = vmatpush.xpose.msra.mxu0 0.0
    %148 = vmatpush.xpose.msra.mxu0 0.0
    %149 = vmatpush.xpose.msra.mxu0 0.0
    %150 = vmatpush.xpose.msra.mxu0 0.0
    %151 = vmatpush.xpose.msra.mxu0 0.0
    %152 = vmatpush.xpose.msra.mxu0 0.0
    %153 = vmatpush.xpose.msra.mxu0 0.0
    %154 = vmatpush.xpose.msra.mxu0 0.0
    %155 = vmatpush.xpose.msra.mxu0 0.0
    %156 = vmatpush.xpose.msra.mxu0 0.0
    %157 = vmatpush.xpose.msra.mxu0 0.0
    %158 = vmatpush.xpose.msra.mxu0 %v141
    %159 = vmatmul.f32.gmra.mxu0 %v139
    %v160 = vpop.f32.mrf.mxu0
    %v161 = vadd.f32 0.0, %v160
    %162 = vdwg.mxu0
    %163 = vrot.lane.b32.xlu0 %v113, 96
    %v164 = vpop.permute.xlu0 %163
    %v165 = vsel %vm138, %v113, 0
    %v167 = vsel %vm138, %v164, 0
    %169 = vmatpush.xpose.msra.mxu0 0.0
    %170 = vmatpush.xpose.msra.mxu0 0.0
    %171 = vmatpush.xpose.msra.mxu0 0.0
    %172 = vmatpush.xpose.msra.mxu0 0.0
    %173 = vmatpush.xpose.msra.mxu0 0.0
    %174 = vmatpush.xpose.msra.mxu0 0.0
    %175 = vmatpush.xpose.msra.mxu0 0.0
    %176 = vmatpush.xpose.msra.mxu0 0.0
    %177 = vmatpush.xpose.msra.mxu0 0.0
    %178 = vmatpush.xpose.msra.mxu0 0.0
    %179 = vmatpush.xpose.msra.mxu0 0.0
    %180 = vmatpush.xpose.msra.mxu0 0.0
    %181 = vmatpush.xpose.msra.mxu0 0.0
    %182 = vmatpush.xpose.msra.mxu0 0.0
    %183 = vmatpush.xpose.msra.mxu0 0.0
    %184 = vmatpush.xpose.msra.mxu0 %v167
    %185 = vmatmul.f32.gmra.mxu0 %v165
    %v186 = vpop.f32.mrf.mxu0
    %v187 = vadd.f32 0.0, %v186
    %188 = vdwg.mxu0
    %189 = vrot.lane.b32.xlu0 %v121, 96
    %v190 = vpop.permute.xlu0 %189
    %v191 = vsel %vm138, %v121, 0
    %v193 = vsel %vm138, %v190, 0
    %195 = vmatpush.xpose.msra.mxu0 0.0
    %196 = vmatpush.xpose.msra.mxu0 0.0
    %197 = vmatpush.xpose.msra.mxu0 0.0
    %198 = vmatpush.xpose.msra.mxu0 0.0
    %199 = vmatpush.xpose.msra.mxu0 0.0
    %200 = vmatpush.xpose.msra.mxu0 0.0
    %201 = vmatpush.xpose.msra.mxu0 0.0
    %202 = vmatpush.xpose.msra.mxu0 0.0
    %203 = vmatpush.xpose.msra.mxu0 0.0
    %204 = vmatpush.xpose.msra.mxu0 0.0
    %205 = vmatpush.xpose.msra.mxu0 0.0
    %206 = vmatpush.xpose.msra.mxu0 0.0
    %207 = vmatpush.xpose.msra.mxu0 0.0
    %208 = vmatpush.xpose.msra.mxu0 0.0
    %209 = vmatpush.xpose.msra.mxu0 0.0
    %210 = vmatpush.xpose.msra.mxu0 %v193
    %211 = vmatmul.f32.gmra.mxu0 %v191
    %v212 = vpop.f32.mrf.mxu0
    %v213 = vadd.f32 0.0, %v212
    %214 = vdwg.mxu0
    %215 = vrot.lane.b32.xlu0 %v129, 96
    %v216 = vpop.permute.xlu0 %215
    %v217 = vsel %vm138, %v129, 0
    %v219 = vsel %vm138, %v216, 0
    %221 = vmatpush.xpose.msra.mxu0 0.0
    %222 = vmatpush.xpose.msra.mxu0 0.0
    %223 = vmatpush.xpose.msra.mxu0 0.0
    %224 = vmatpush.xpose.msra.mxu0 0.0
    %225 = vmatpush.xpose.msra.mxu0 0.0
    %226 = vmatpush.xpose.msra.mxu0 0.0
    %227 = vmatpush.xpose.msra.mxu0 0.0
    %228 = vmatpush.xpose.msra.mxu0 0.0
    %229 = vmatpush.xpose.msra.mxu0 0.0
    %230 = vmatpush.xpose.msra.mxu0 0.0
    %231 = vmatpush.xpose.msra.mxu0 0.0
    %232 = vmatpush.xpose.msra.mxu0 0.0
    %233 = vmatpush.xpose.msra.mxu0 0.0
    %234 = vmatpush.xpose.msra.mxu0 0.0
    %235 = vmatpush.xpose.msra.mxu0 0.0
    %236 = vmatpush.xpose.msra.mxu0 %v219
    %237 = vmatmul.f32.gmra.mxu0 %v217
    %v238 = vpop.f32.mrf.mxu0
    %v239 = vadd.f32 0.0, %v238
    %240 = vdwg.mxu0
    %241 = vrot.lane.b32.xlu0 %v109, 96
    %v242 = vpop.permute.xlu0 %241
    %v243 = vsel %vm138, %v109, 0
    %v245 = vsel %vm138, %v242, 0
    %247 = vmatpush.xpose.msra.mxu0 0.0
    %248 = vmatpush.xpose.msra.mxu0 0.0
    %249 = vmatpush.xpose.msra.mxu0 0.0
    %250 = vmatpush.xpose.msra.mxu0 0.0
    %251 = vmatpush.xpose.msra.mxu0 0.0
    %252 = vmatpush.xpose.msra.mxu0 0.0
    %253 = vmatpush.xpose.msra.mxu0 0.0
    %254 = vmatpush.xpose.msra.mxu0 0.0
    %255 = vmatpush.xpose.msra.mxu0 0.0
    %256 = vmatpush.xpose.msra.mxu0 0.0
    %257 = vmatpush.xpose.msra.mxu0 0.0
    %258 = vmatpush.xpose.msra.mxu0 0.0
    %259 = vmatpush.xpose.msra.mxu0 0.0
    %260 = vmatpush.xpose.msra.mxu0 0.0
    %261 = vmatpush.xpose.msra.mxu0 0.0
    %262 = vmatpush.xpose.msra.mxu0 %v245
    %263 = vmatmul.f32.gmra.mxu0 %v243
    %v264 = vpop.f32.mrf.mxu0
    %v265 = vadd.f32 0.0, %v264
    %266 = vdwg.mxu0
    %267 = vrot.lane.b32.xlu0 %v115, 96
    %v268 = vpop.permute.xlu0 %267
    %v269 = vsel %vm138, %v115, 0
    %v271 = vsel %vm138, %v268, 0
    %273 = vmatpush.xpose.msra.mxu0 0.0
    %274 = vmatpush.xpose.msra.mxu0 0.0
    %275 = vmatpush.xpose.msra.mxu0 0.0
    %276 = vmatpush.xpose.msra.mxu0 0.0
    %277 = vmatpush.xpose.msra.mxu0 0.0
    %278 = vmatpush.xpose.msra.mxu0 0.0
    %279 = vmatpush.xpose.msra.mxu0 0.0
    %280 = vmatpush.xpose.msra.mxu0 0.0
    %281 = vmatpush.xpose.msra.mxu0 0.0
    %282 = vmatpush.xpose.msra.mxu0 0.0
    %283 = vmatpush.xpose.msra.mxu0 0.0
    %284 = vmatpush.xpose.msra.mxu0 0.0
    %285 = vmatpush.xpose.msra.mxu0 0.0
    %286 = vmatpush.xpose.msra.mxu0 0.0
    %287 = vmatpush.xpose.msra.mxu0 0.0
    %288 = vmatpush.xpose.msra.mxu0 %v271
    %289 = vmatmul.f32.gmra.mxu0 %v269
    %v290 = vpop.f32.mrf.mxu0
    %v291 = vadd.f32 0.0, %v290
    %292 = vdwg.mxu0
    %293 = vrot.lane.b32.xlu0 %v123, 96
    %v294 = vpop.permute.xlu0 %293
    %v295 = vsel %vm138, %v123, 0
    %v297 = vsel %vm138, %v294, 0
    %299 = vmatpush.xpose.msra.mxu0 0.0
    %300 = vmatpush.xpose.msra.mxu0 0.0
    %301 = vmatpush.xpose.msra.mxu0 0.0
    %302 = vmatpush.xpose.msra.mxu0 0.0
    %303 = vmatpush.xpose.msra.mxu0 0.0
    %304 = vmatpush.xpose.msra.mxu0 0.0
    %305 = vmatpush.xpose.msra.mxu0 0.0
    %306 = vmatpush.xpose.msra.mxu0 0.0
    %307 = vmatpush.xpose.msra.mxu0 0.0
    %308 = vmatpush.xpose.msra.mxu0 0.0
    %309 = vmatpush.xpose.msra.mxu0 0.0
    %310 = vmatpush.xpose.msra.mxu0 0.0
    %311 = vmatpush.xpose.msra.mxu0 0.0
    %312 = vmatpush.xpose.msra.mxu0 0.0
    %313 = vmatpush.xpose.msra.mxu0 0.0
    %314 = vmatpush.xpose.msra.mxu0 %v297
    %315 = vmatmul.f32.gmra.mxu0 %v295
    %v316 = vpop.f32.mrf.mxu0
    %v317 = vadd.f32 0.0, %v316
    %318 = vdwg.mxu0
    %319 = vrot.lane.b32.xlu0 %v131, 96
    %v320 = vpop.permute.xlu0 %319
    %v321 = vsel %vm138, %v131, 0
    %v323 = vsel %vm138, %v320, 0
    %325 = vmatpush.xpose.msra.mxu0 0.0
    %326 = vmatpush.xpose.msra.mxu0 0.0
    %327 = vmatpush.xpose.msra.mxu0 0.0
    %328 = vmatpush.xpose.msra.mxu0 0.0
    %329 = vmatpush.xpose.msra.mxu0 0.0
    %330 = vmatpush.xpose.msra.mxu0 0.0
    %331 = vmatpush.xpose.msra.mxu0 0.0
    %332 = vmatpush.xpose.msra.mxu0 0.0
    %333 = vmatpush.xpose.msra.mxu0 0.0
    %334 = vmatpush.xpose.msra.mxu0 0.0
    %335 = vmatpush.xpose.msra.mxu0 0.0
    %336 = vmatpush.xpose.msra.mxu0 0.0
    %337 = vmatpush.xpose.msra.mxu0 0.0
    %338 = vmatpush.xpose.msra.mxu0 0.0
    %339 = vmatpush.xpose.msra.mxu0 0.0
    %340 = vmatpush.xpose.msra.mxu0 %v323
    %341 = vmatmul.f32.gmra.mxu0 %v321
    %v342 = vpop.f32.mrf.mxu0
    %v343 = vadd.f32 0.0, %v342
    %344 = vdwg.mxu0
    %345 = vrot.lane.b32.xlu0 %v106, 96
    %v346 = vpop.permute.xlu0 %345
    %v347 = vsel %vm138, %v106, 0
    %v349 = vsel %vm138, %v346, 0
    %351 = vmatpush.xpose.msra.mxu0 0.0
    %352 = vmatpush.xpose.msra.mxu0 0.0
    %353 = vmatpush.xpose.msra.mxu0 0.0
    %354 = vmatpush.xpose.msra.mxu0 0.0
    %355 = vmatpush.xpose.msra.mxu0 0.0
    %356 = vmatpush.xpose.msra.mxu0 0.0
    %357 = vmatpush.xpose.msra.mxu0 0.0
    %358 = vmatpush.xpose.msra.mxu0 0.0
    %359 = vmatpush.xpose.msra.mxu0 0.0
    %360 = vmatpush.xpose.msra.mxu0 0.0
    %361 = vmatpush.xpose.msra.mxu0 0.0
    %362 = vmatpush.xpose.msra.mxu0 0.0
    %363 = vmatpush.xpose.msra.mxu0 0.0
    %364 = vmatpush.xpose.msra.mxu0 0.0
    %365 = vmatpush.xpose.msra.mxu0 0.0
    %366 = vmatpush.xpose.msra.mxu0 %v349
    %367 = vmatmul.f32.gmra.mxu0 %v347
    %v368 = vpop.f32.mrf.mxu0
    %v369 = vadd.f32 0.0, %v368
    %370 = vdwg.mxu0
    %371 = vrot.lane.b32.xlu0 %v117, 96
    %v372 = vpop.permute.xlu0 %371
    %v373 = vsel %vm138, %v117, 0
    %v375 = vsel %vm138, %v372, 0
    %377 = vmatpush.xpose.msra.mxu0 0.0
    %378 = vmatpush.xpose.msra.mxu0 0.0
    %379 = vmatpush.xpose.msra.mxu0 0.0
    %380 = vmatpush.xpose.msra.mxu0 0.0
    %381 = vmatpush.xpose.msra.mxu0 0.0
    %382 = vmatpush.xpose.msra.mxu0 0.0
    %383 = vmatpush.xpose.msra.mxu0 0.0
    %384 = vmatpush.xpose.msra.mxu0 0.0
    %385 = vmatpush.xpose.msra.mxu0 0.0
    %386 = vmatpush.xpose.msra.mxu0 0.0
    %387 = vmatpush.xpose.msra.mxu0 0.0
    %388 = vmatpush.xpose.msra.mxu0 0.0
    %389 = vmatpush.xpose.msra.mxu0 0.0
    %390 = vmatpush.xpose.msra.mxu0 0.0
    %391 = vmatpush.xpose.msra.mxu0 0.0
    %392 = vmatpush.xpose.msra.mxu0 %v375
    %393 = vmatmul.f32.gmra.mxu0 %v373
    %v394 = vpop.f32.mrf.mxu0
    %v395 = vadd.f32 0.0, %v394
    %396 = vdwg.mxu0
    %397 = vrot.lane.b32.xlu0 %v125, 96
    %v398 = vpop.permute.xlu0 %397
    %v399 = vsel %vm138, %v125, 0
    %v401 = vsel %vm138, %v398, 0
    %403 = vmatpush.xpose.msra.mxu0 0.0
    %404 = vmatpush.xpose.msra.mxu0 0.0
    %405 = vmatpush.xpose.msra.mxu0 0.0
    %406 = vmatpush.xpose.msra.mxu0 0.0
    %407 = vmatpush.xpose.msra.mxu0 0.0
    %408 = vmatpush.xpose.msra.mxu0 0.0
    %409 = vmatpush.xpose.msra.mxu0 0.0
    %410 = vmatpush.xpose.msra.mxu0 0.0
    %411 = vmatpush.xpose.msra.mxu0 0.0
    %412 = vmatpush.xpose.msra.mxu0 0.0
    %413 = vmatpush.xpose.msra.mxu0 0.0
    %414 = vmatpush.xpose.msra.mxu0 0.0
    %415 = vmatpush.xpose.msra.mxu0 0.0
    %416 = vmatpush.xpose.msra.mxu0 0.0
    %417 = vmatpush.xpose.msra.mxu0 0.0
    %418 = vmatpush.xpose.msra.mxu0 %v401
    %419 = vmatmul.f32.gmra.mxu0 %v399
    %v420 = vpop.f32.mrf.mxu0
    %v421 = vadd.f32 0.0, %v420
    %422 = vdwg.mxu0
    %423 = vrot.lane.b32.xlu0 %v133, 96
    %v424 = vpop.permute.xlu0 %423
    %v425 = vsel %vm138, %v133, 0
    %v427 = vsel %vm138, %v424, 0
    %429 = vmatpush.xpose.msra.mxu0 0.0
    %430 = vmatpush.xpose.msra.mxu0 0.0
    %431 = vmatpush.xpose.msra.mxu0 0.0
    %432 = vmatpush.xpose.msra.mxu0 0.0
    %433 = vmatpush.xpose.msra.mxu0 0.0
    %434 = vmatpush.xpose.msra.mxu0 0.0
    %435 = vmatpush.xpose.msra.mxu0 0.0
    %436 = vmatpush.xpose.msra.mxu0 0.0
    %437 = vmatpush.xpose.msra.mxu0 0.0
    %438 = vmatpush.xpose.msra.mxu0 0.0
    %439 = vmatpush.xpose.msra.mxu0 0.0
    %440 = vmatpush.xpose.msra.mxu0 0.0
    %441 = vmatpush.xpose.msra.mxu0 0.0
    %442 = vmatpush.xpose.msra.mxu0 0.0
    %443 = vmatpush.xpose.msra.mxu0 0.0
    %444 = vmatpush.xpose.msra.mxu0 %v427
    %445 = vmatmul.f32.gmra.mxu0 %v425
    %v446 = vpop.f32.mrf.mxu0
    %v447 = vadd.f32 0.0, %v446
    %448 = vdwg.mxu0
    %449 = vrot.lane.b32.xlu0 %v111, 96
    %v450 = vpop.permute.xlu0 %449
    %v451 = vsel %vm138, %v111, 0
    %v453 = vsel %vm138, %v450, 0
    %455 = vmatpush.xpose.msra.mxu0 0.0
    %456 = vmatpush.xpose.msra.mxu0 0.0
    %457 = vmatpush.xpose.msra.mxu0 0.0
    %458 = vmatpush.xpose.msra.mxu0 0.0
    %459 = vmatpush.xpose.msra.mxu0 0.0
    %460 = vmatpush.xpose.msra.mxu0 0.0
    %461 = vmatpush.xpose.msra.mxu0 0.0
    %462 = vmatpush.xpose.msra.mxu0 0.0
    %463 = vmatpush.xpose.msra.mxu0 0.0
    %464 = vmatpush.xpose.msra.mxu0 0.0
    %465 = vmatpush.xpose.msra.mxu0 0.0
    %466 = vmatpush.xpose.msra.mxu0 0.0
    %467 = vmatpush.xpose.msra.mxu0 0.0
    %468 = vmatpush.xpose.msra.mxu0 0.0
    %469 = vmatpush.xpose.msra.mxu0 0.0
    %470 = vmatpush.xpose.msra.mxu0 %v453
    %471 = vmatmul.f32.gmra.mxu0 %v451
    %v472 = vpop.f32.mrf.mxu0
    %v473 = vadd.f32 0.0, %v472
    %474 = vdwg.mxu0
    %475 = vrot.lane.b32.xlu0 %v119, 96
    %v476 = vpop.permute.xlu0 %475
    %v477 = vsel %vm138, %v119, 0
    %v479 = vsel %vm138, %v476, 0
    %481 = vmatpush.xpose.msra.mxu0 0.0
    %482 = vmatpush.xpose.msra.mxu0 0.0
    %483 = vmatpush.xpose.msra.mxu0 0.0
    %484 = vmatpush.xpose.msra.mxu0 0.0
    %485 = vmatpush.xpose.msra.mxu0 0.0
    %486 = vmatpush.xpose.msra.mxu0 0.0
    %487 = vmatpush.xpose.msra.mxu0 0.0
    %488 = vmatpush.xpose.msra.mxu0 0.0
    %489 = vmatpush.xpose.msra.mxu0 0.0
    %490 = vmatpush.xpose.msra.mxu0 0.0
    %491 = vmatpush.xpose.msra.mxu0 0.0
    %492 = vmatpush.xpose.msra.mxu0 0.0
    %493 = vmatpush.xpose.msra.mxu0 0.0
    %494 = vmatpush.xpose.msra.mxu0 0.0
    %495 = vmatpush.xpose.msra.mxu0 0.0
    %496 = vmatpush.xpose.msra.mxu0 %v479
    %497 = vmatmul.f32.gmra.mxu0 %v477
    %v498 = vpop.f32.mrf.mxu0
    %v499 = vadd.f32 0.0, %v498
    %500 = vdwg.mxu0
    %501 = vrot.lane.b32.xlu0 %v127, 96
    %v502 = vpop.permute.xlu0 %501
    %v503 = vsel %vm138, %v127, 0
    %v505 = vsel %vm138, %v502, 0
    %507 = vmatpush.xpose.msra.mxu0 0.0
    %508 = vmatpush.xpose.msra.mxu0 0.0
    %509 = vmatpush.xpose.msra.mxu0 0.0
    %510 = vmatpush.xpose.msra.mxu0 0.0
    %511 = vmatpush.xpose.msra.mxu0 0.0
    %512 = vmatpush.xpose.msra.mxu0 0.0
    %513 = vmatpush.xpose.msra.mxu0 0.0
    %514 = vmatpush.xpose.msra.mxu0 0.0
    %515 = vmatpush.xpose.msra.mxu0 0.0
    %516 = vmatpush.xpose.msra.mxu0 0.0
    %517 = vmatpush.xpose.msra.mxu0 0.0
    %518 = vmatpush.xpose.msra.mxu0 0.0
    %519 = vmatpush.xpose.msra.mxu0 0.0
    %520 = vmatpush.xpose.msra.mxu0 0.0
    %521 = vmatpush.xpose.msra.mxu0 0.0
    %522 = vmatpush.xpose.msra.mxu0 %v505
    %523 = vmatmul.f32.gmra.mxu0 %v503
    %v524 = vpop.f32.mrf.mxu0
    %v525 = vadd.f32 0.0, %v524
    %526 = vdwg.mxu0
    %527 = vrot.lane.b32.xlu0 %v135, 96
    %v528 = vpop.permute.xlu0 %527
    %v529 = vsel %vm138, %v135, 0
    %v531 = vsel %vm138, %v528, 0
    %533 = vmatpush.xpose.msra.mxu0 0.0
    %534 = vmatpush.xpose.msra.mxu0 0.0
    %535 = vmatpush.xpose.msra.mxu0 0.0
    %536 = vmatpush.xpose.msra.mxu0 0.0
    %537 = vmatpush.xpose.msra.mxu0 0.0
    %538 = vmatpush.xpose.msra.mxu0 0.0
    %539 = vmatpush.xpose.msra.mxu0 0.0
    %540 = vmatpush.xpose.msra.mxu0 0.0
    %541 = vmatpush.xpose.msra.mxu0 0.0
    %542 = vmatpush.xpose.msra.mxu0 0.0
    %543 = vmatpush.xpose.msra.mxu0 0.0
    %544 = vmatpush.xpose.msra.mxu0 0.0
    %545 = vmatpush.xpose.msra.mxu0 0.0
    %546 = vmatpush.xpose.msra.mxu0 0.0
    %547 = vmatpush.xpose.msra.mxu0 0.0
    %548 = vmatpush.xpose.msra.mxu0 %v531
    %549 = vmatmul.f32.gmra.mxu0 %v529
    %v550 = vpop.f32.mrf.mxu0
    %v551 = vadd.f32 0.0, %v550
    %552 = vdwg.mxu0
    %v553 = vmul.f32 %v161, 0.35355338
    %v554 = vmul.f32 %v187, 0.35355338
    %v555 = vmul.f32 %v213, 0.35355338
    %v556 = vmul.f32 %v239, 0.35355338
    %v557 = vmul.f32 %v265, 0.35355338
    %v558 = vmul.f32 %v291, 0.35355338
    %v559 = vmul.f32 %v317, 0.35355338
    %v560 = vmul.f32 %v343, 0.35355338
    %v561 = vmul.f32 %v369, 0.35355338
    %v562 = vmul.f32 %v395, 0.35355338
    %v563 = vmul.f32 %v421, 0.35355338
    %v564 = vmul.f32 %v447, 0.35355338
    %v565 = vmul.f32 %v473, 0.35355338
    %v566 = vmul.f32 %v499, 0.35355338
    %v567 = vmul.f32 %v525, 0.35355338
    %v568 = vmul.f32 %v551, 0.35355338
    %vm569 = vcmask 27648
    %v570 = vsel %vm569, %v553, -inf
    %571 = vmax.xlane.f32.xlu0 %v570
    %v572 = vpop.xlane.xlu0 %571
    %v573 = vsel %vm569, %v554, -inf
    %574 = vmax.xlane.f32.xlu0 %v573
    %v575 = vpop.xlane.xlu0 %574
    %v576 = vsel %vm569, %v555, -inf
    %577 = vmax.xlane.f32.xlu0 %v576
    %v578 = vpop.xlane.xlu0 %577
    %v579 = vsel %vm569, %v556, -inf
    %580 = vmax.xlane.f32.xlu0 %v579
    %v581 = vpop.xlane.xlu0 %580
    %v582 = vsel %vm569, %v557, -inf
    %583 = vmax.xlane.f32.xlu0 %v582
    %v584 = vpop.xlane.xlu0 %583
    %v585 = vsel %vm569, %v558, -inf
    %586 = vmax.xlane.f32.xlu0 %v585
    %v587 = vpop.xlane.xlu0 %586
    %v588 = vsel %vm569, %v559, -inf
    %589 = vmax.xlane.f32.xlu0 %v588
    %v590 = vpop.xlane.xlu0 %589
    %v591 = vsel %vm569, %v560, -inf
    %592 = vmax.xlane.f32.xlu0 %v591
    %v593 = vpop.xlane.xlu0 %592
    %v594 = vsel %vm569, %v561, -inf
    %595 = vmax.xlane.f32.xlu0 %v594
    %v596 = vpop.xlane.xlu0 %595
    %v597 = vsel %vm569, %v562, -inf
    %598 = vmax.xlane.f32.xlu0 %v597
    %v599 = vpop.xlane.xlu0 %598
    %v600 = vsel %vm569, %v563, -inf
    %601 = vmax.xlane.f32.xlu0 %v600
    %v602 = vpop.xlane.xlu0 %601
    %v603 = vsel %vm569, %v564, -inf
    %604 = vmax.xlane.f32.xlu0 %v603
    %v605 = vpop.xlane.xlu0 %604
    %v606 = vsel %vm569, %v565, -inf
    %607 = vmax.xlane.f32.xlu0 %v606
    %v608 = vpop.xlane.xlu0 %607
    %v609 = vsel %vm569, %v566, -inf
    %610 = vmax.xlane.f32.xlu0 %v609
    %v611 = vpop.xlane.xlu0 %610
    %v612 = vsel %vm569, %v567, -inf
    %613 = vmax.xlane.f32.xlu0 %v612
    %v614 = vpop.xlane.xlu0 %613
    %v615 = vsel %vm569, %v568, -inf
    %616 = vmax.xlane.f32.xlu0 %v615
    %v617 = vpop.xlane.xlu0 %616
    %v618 = vsub.f32 %v553, %v572
    %v619 = vsub.f32 %v554, %v575
    %v620 = vsub.f32 %v555, %v578
    %v621 = vsub.f32 %v556, %v581
    %v622 = vsub.f32 %v557, %v584
    %v623 = vsub.f32 %v558, %v587
    %v624 = vsub.f32 %v559, %v590
    %v625 = vsub.f32 %v560, %v593
    %v626 = vsub.f32 %v561, %v596
    %v627 = vsub.f32 %v562, %v599
    %v628 = vsub.f32 %v563, %v602
    %v629 = vsub.f32 %v564, %v605
    %v630 = vsub.f32 %v565, %v608
    %v631 = vsub.f32 %v566, %v611
    %v632 = vsub.f32 %v567, %v614
    %v633 = vsub.f32 %v568, %v617
    %v634 = vmul.f32 %v618, 1.442695
    %v635 = vpow.pop %v634
    %v636 = vmul.f32 %v619, 1.442695
    %v637 = vpow.pop %v636
    %v638 = vmul.f32 %v620, 1.442695
    %v639 = vpow.pop %v638
    %v640 = vmul.f32 %v621, 1.442695
    %v641 = vpow.pop %v640
    %v642 = vmul.f32 %v622, 1.442695
    %v643 = vpow.pop %v642
    %v644 = vmul.f32 %v623, 1.442695
    %v645 = vpow.pop %v644
    %v646 = vmul.f32 %v624, 1.442695
    %v647 = vpow.pop %v646
    %v648 = vmul.f32 %v625, 1.442695
    %v649 = vpow.pop %v648
    %v650 = vmul.f32 %v626, 1.442695
    %v651 = vpow.pop %v650
    %v652 = vmul.f32 %v627, 1.442695
    %v653 = vpow.pop %v652
    %v654 = vmul.f32 %v628, 1.442695
    %v655 = vpow.pop %v654
    %v656 = vmul.f32 %v629, 1.442695
    %v657 = vpow.pop %v656
    %v658 = vmul.f32 %v630, 1.442695
    %v659 = vpow.pop %v658
    %v660 = vmul.f32 %v631, 1.442695
    %v661 = vpow.pop %v660
    %v662 = vmul.f32 %v632, 1.442695
    %v663 = vpow.pop %v662
    %v664 = vmul.f32 %v633, 1.442695
    %v665 = vpow.pop %v664
    %v666 = vsel %vm569, %v635, 0.0
    %667 = vadd.xlane.f32.xlu0 %v666
    %v668 = vpop.xlane.xlu0 %667
    %v669 = vsel %vm569, %v637, 0.0
    %670 = vadd.xlane.f32.xlu0 %v669
    %v671 = vpop.xlane.xlu0 %670
    %v672 = vsel %vm569, %v639, 0.0
    %673 = vadd.xlane.f32.xlu0 %v672
    %v674 = vpop.xlane.xlu0 %673
    %v675 = vsel %vm569, %v641, 0.0
    %676 = vadd.xlane.f32.xlu0 %v675
    %v677 = vpop.xlane.xlu0 %676
    %v678 = vsel %vm569, %v643, 0.0
    %679 = vadd.xlane.f32.xlu0 %v678
    %v680 = vpop.xlane.xlu0 %679
    %v681 = vsel %vm569, %v645, 0.0
    %682 = vadd.xlane.f32.xlu0 %v681
    %v683 = vpop.xlane.xlu0 %682
    %v684 = vsel %vm569, %v647, 0.0
    %685 = vadd.xlane.f32.xlu0 %v684
    %v686 = vpop.xlane.xlu0 %685
    %v687 = vsel %vm569, %v649, 0.0
    %688 = vadd.xlane.f32.xlu0 %v687
    %v689 = vpop.xlane.xlu0 %688
    %v690 = vsel %vm569, %v651, 0.0
    %691 = vadd.xlane.f32.xlu0 %v690
    %v692 = vpop.xlane.xlu0 %691
    %v693 = vsel %vm569, %v653, 0.0
    %694 = vadd.xlane.f32.xlu0 %v693
    %v695 = vpop.xlane.xlu0 %694
    %v696 = vsel %vm569, %v655, 0.0
    %697 = vadd.xlane.f32.xlu0 %v696
    %v698 = vpop.xlane.xlu0 %697
    %v699 = vsel %vm569, %v657, 0.0
    %700 = vadd.xlane.f32.xlu0 %v699
    %v701 = vpop.xlane.xlu0 %700
    %v702 = vsel %vm569, %v659, 0.0
    %703 = vadd.xlane.f32.xlu0 %v702
    %v704 = vpop.xlane.xlu0 %703
    %v705 = vsel %vm569, %v661, 0.0
    %706 = vadd.xlane.f32.xlu0 %v705
    %v707 = vpop.xlane.xlu0 %706
    %v708 = vsel %vm569, %v663, 0.0
    %709 = vadd.xlane.f32.xlu0 %v708
    %v710 = vpop.xlane.xlu0 %709
    %v711 = vsel %vm569, %v665, 0.0
    %712 = vadd.xlane.f32.xlu0 %v711
    %v713 = vpop.xlane.xlu0 %712
    %v714 = vrcp.pop %v668
    %v715 = vmul.f32 %v668, %v714
    %v716 = vsub.f32 1.0, %v715
    %v717 = vmul.f32 %v714, %v716
    %v718 = vadd.f32 %v714, %v717
    %vm719 = vweird.f32 %v668
    %vm720 = vweird.f32 %v714
    %vm721 = vmor %vm719, %vm720
    %v722 = vsel %vm721, %v714, %v718
    %v723 = vand.u32 2147483647, %v668
    %vm724 = vcmp.eq.f32.partialorder %v723, 8.507059e+37
    %v725 = vand.u32 %v668, 2147483648
    %v726 = vor.u32 1.1754944e-38, %v725
    %v727 = vsel %vm724, %v726, %v722
    %v728 = vmul.f32 %v635, %v727
    %v729 = vrcp.pop %v671
    %v730 = vmul.f32 %v671, %v729
    %v731 = vsub.f32 1.0, %v730
    %v732 = vmul.f32 %v729, %v731
    %v733 = vadd.f32 %v729, %v732
    %vm734 = vweird.f32 %v671
    %vm735 = vweird.f32 %v729
    %vm736 = vmor %vm734, %vm735
    %v737 = vsel %vm736, %v729, %v733
    %v738 = vand.u32 2147483647, %v671
    %vm739 = vcmp.eq.f32.partialorder %v738, 8.507059e+37
    %v740 = vand.u32 %v671, 2147483648
    %v741 = vor.u32 1.1754944e-38, %v740
    %v742 = vsel %vm739, %v741, %v737
    %v743 = vmul.f32 %v637, %v742
    %v744 = vrcp.pop %v674
    %v745 = vmul.f32 %v674, %v744
    %v746 = vsub.f32 1.0, %v745
    %v747 = vmul.f32 %v744, %v746
    %v748 = vadd.f32 %v744, %v747
    %vm749 = vweird.f32 %v674
    %vm750 = vweird.f32 %v744
    %vm751 = vmor %vm749, %vm750
    %v752 = vsel %vm751, %v744, %v748
    %v753 = vand.u32 2147483647, %v674
    %vm754 = vcmp.eq.f32.partialorder %v753, 8.507059e+37
    %v755 = vand.u32 %v674, 2147483648
    %v756 = vor.u32 1.1754944e-38, %v755
    %v757 = vsel %vm754, %v756, %v752
    %v758 = vmul.f32 %v639, %v757
    %v759 = vrcp.pop %v677
    %v760 = vmul.f32 %v677, %v759
    %v761 = vsub.f32 1.0, %v760
    %v762 = vmul.f32 %v759, %v761
    %v763 = vadd.f32 %v759, %v762
    %vm764 = vweird.f32 %v677
    %vm765 = vweird.f32 %v759
    %vm766 = vmor %vm764, %vm765
    %v767 = vsel %vm766, %v759, %v763
    %v768 = vand.u32 2147483647, %v677
    %vm769 = vcmp.eq.f32.partialorder %v768, 8.507059e+37
    %v770 = vand.u32 %v677, 2147483648
    %v771 = vor.u32 1.1754944e-38, %v770
    %v772 = vsel %vm769, %v771, %v767
    %v773 = vmul.f32 %v641, %v772
    %v774 = vrcp.pop %v680
    %v775 = vmul.f32 %v680, %v774
    %v776 = vsub.f32 1.0, %v775
    %v777 = vmul.f32 %v774, %v776
    %v778 = vadd.f32 %v774, %v777
    %vm779 = vweird.f32 %v680
    %vm780 = vweird.f32 %v774
    %vm781 = vmor %vm779, %vm780
    %v782 = vsel %vm781, %v774, %v778
    %v783 = vand.u32 2147483647, %v680
    %vm784 = vcmp.eq.f32.partialorder %v783, 8.507059e+37
    %v785 = vand.u32 %v680, 2147483648
    %v786 = vor.u32 1.1754944e-38, %v785
    %v787 = vsel %vm784, %v786, %v782
    %v788 = vmul.f32 %v643, %v787
    %v789 = vrcp.pop %v683
    %v790 = vmul.f32 %v683, %v789
    %v791 = vsub.f32 1.0, %v790
    %v792 = vmul.f32 %v789, %v791
    %v793 = vadd.f32 %v789, %v792
    %vm794 = vweird.f32 %v683
    %vm795 = vweird.f32 %v789
    %vm796 = vmor %vm794, %vm795
    %v797 = vsel %vm796, %v789, %v793
    %v798 = vand.u32 2147483647, %v683
    %vm799 = vcmp.eq.f32.partialorder %v798, 8.507059e+37
    %v800 = vand.u32 %v683, 2147483648
    %v801 = vor.u32 1.1754944e-38, %v800
    %v802 = vsel %vm799, %v801, %v797
    %v803 = vmul.f32 %v645, %v802
    %v804 = vrcp.pop %v686
    %v805 = vmul.f32 %v686, %v804
    %v806 = vsub.f32 1.0, %v805
    %v807 = vmul.f32 %v804, %v806
    %v808 = vadd.f32 %v804, %v807
    %vm809 = vweird.f32 %v686
    %vm810 = vweird.f32 %v804
    %vm811 = vmor %vm809, %vm810
    %v812 = vsel %vm811, %v804, %v808
    %v813 = vand.u32 2147483647, %v686
    %vm814 = vcmp.eq.f32.partialorder %v813, 8.507059e+37
    %v815 = vand.u32 %v686, 2147483648
    %v816 = vor.u32 1.1754944e-38, %v815
    %v817 = vsel %vm814, %v816, %v812
    %v818 = vmul.f32 %v647, %v817
    %v819 = vrcp.pop %v689
    %v820 = vmul.f32 %v689, %v819
    %v821 = vsub.f32 1.0, %v820
    %v822 = vmul.f32 %v819, %v821
    %v823 = vadd.f32 %v819, %v822
    %vm824 = vweird.f32 %v689
    %vm825 = vweird.f32 %v819
    %vm826 = vmor %vm824, %vm825
    %v827 = vsel %vm826, %v819, %v823
    %v828 = vand.u32 2147483647, %v689
    %vm829 = vcmp.eq.f32.partialorder %v828, 8.507059e+37
    %v830 = vand.u32 %v689, 2147483648
    %v831 = vor.u32 1.1754944e-38, %v830
    %v832 = vsel %vm829, %v831, %v827
    %v833 = vmul.f32 %v649, %v832
    %v834 = vrcp.pop %v692
    %v835 = vmul.f32 %v692, %v834
    %v836 = vsub.f32 1.0, %v835
    %v837 = vmul.f32 %v834, %v836
    %v838 = vadd.f32 %v834, %v837
    %vm839 = vweird.f32 %v692
    %vm840 = vweird.f32 %v834
    %vm841 = vmor %vm839, %vm840
    %v842 = vsel %vm841, %v834, %v838
    %v843 = vand.u32 2147483647, %v692
    %vm844 = vcmp.eq.f32.partialorder %v843, 8.507059e+37
    %v845 = vand.u32 %v692, 2147483648
    %v846 = vor.u32 1.1754944e-38, %v845
    %v847 = vsel %vm844, %v846, %v842
    %v848 = vmul.f32 %v651, %v847
    %v849 = vrcp.pop %v695
    %v850 = vmul.f32 %v695, %v849
    %v851 = vsub.f32 1.0, %v850
    %v852 = vmul.f32 %v849, %v851
    %v853 = vadd.f32 %v849, %v852
    %vm854 = vweird.f32 %v695
    %vm855 = vweird.f32 %v849
    %vm856 = vmor %vm854, %vm855
    %v857 = vsel %vm856, %v849, %v853
    %v858 = vand.u32 2147483647, %v695
    %vm859 = vcmp.eq.f32.partialorder %v858, 8.507059e+37
    %v860 = vand.u32 %v695, 2147483648
    %v861 = vor.u32 1.1754944e-38, %v860
    %v862 = vsel %vm859, %v861, %v857
    %v863 = vmul.f32 %v653, %v862
    %v864 = vrcp.pop %v698
    %v865 = vmul.f32 %v698, %v864
    %v866 = vsub.f32 1.0, %v865
    %v867 = vmul.f32 %v864, %v866
    %v868 = vadd.f32 %v864, %v867
    %vm869 = vweird.f32 %v698
    %vm870 = vweird.f32 %v864
    %vm871 = vmor %vm869, %vm870
    %v872 = vsel %vm871, %v864, %v868
    %v873 = vand.u32 2147483647, %v698
    %vm874 = vcmp.eq.f32.partialorder %v873, 8.507059e+37
    %v875 = vand.u32 %v698, 2147483648
    %v876 = vor.u32 1.1754944e-38, %v875
    %v877 = vsel %vm874, %v876, %v872
    %v878 = vmul.f32 %v655, %v877
    %v879 = vrcp.pop %v701
    %v880 = vmul.f32 %v701, %v879
    %v881 = vsub.f32 1.0, %v880
    %v882 = vmul.f32 %v879, %v881
    %v883 = vadd.f32 %v879, %v882
    %vm884 = vweird.f32 %v701
    %vm885 = vweird.f32 %v879
    %vm886 = vmor %vm884, %vm885
    %v887 = vsel %vm886, %v879, %v883
    %v888 = vand.u32 2147483647, %v701
    %vm889 = vcmp.eq.f32.partialorder %v888, 8.507059e+37
    %v890 = vand.u32 %v701, 2147483648
    %v891 = vor.u32 1.1754944e-38, %v890
    %v892 = vsel %vm889, %v891, %v887
    %v893 = vmul.f32 %v657, %v892
    %v894 = vrcp.pop %v704
    %v895 = vmul.f32 %v704, %v894
    %v896 = vsub.f32 1.0, %v895
    %v897 = vmul.f32 %v894, %v896
    %v898 = vadd.f32 %v894, %v897
    %vm899 = vweird.f32 %v704
    %vm900 = vweird.f32 %v894
    %vm901 = vmor %vm899, %vm900
    %v902 = vsel %vm901, %v894, %v898
    %v903 = vand.u32 2147483647, %v704
    %vm904 = vcmp.eq.f32.partialorder %v903, 8.507059e+37
    %v905 = vand.u32 %v704, 2147483648
    %v906 = vor.u32 1.1754944e-38, %v905
    %v907 = vsel %vm904, %v906, %v902
    %v908 = vmul.f32 %v659, %v907
    %v909 = vrcp.pop %v707
    %v910 = vmul.f32 %v707, %v909
    %v911 = vsub.f32 1.0, %v910
    %v912 = vmul.f32 %v909, %v911
    %v913 = vadd.f32 %v909, %v912
    %vm914 = vweird.f32 %v707
    %vm915 = vweird.f32 %v909
    %vm916 = vmor %vm914, %vm915
    %v917 = vsel %vm916, %v909, %v913
    %v918 = vand.u32 2147483647, %v707
    %vm919 = vcmp.eq.f32.partialorder %v918, 8.507059e+37
    %v920 = vand.u32 %v707, 2147483648
    %v921 = vor.u32 1.1754944e-38, %v920
    %v922 = vsel %vm919, %v921, %v917
    %v923 = vmul.f32 %v661, %v922
    %v924 = vrcp.pop %v710
    %v925 = vmul.f32 %v710, %v924
    %v926 = vsub.f32 1.0, %v925
    %v927 = vmul.f32 %v924, %v926
    %v928 = vadd.f32 %v924, %v927
    %vm929 = vweird.f32 %v710
    %vm930 = vweird.f32 %v924
    %vm931 = vmor %vm929, %vm930
    %v932 = vsel %vm931, %v924, %v928
    %v933 = vand.u32 2147483647, %v710
    %vm934 = vcmp.eq.f32.partialorder %v933, 8.507059e+37
    %v935 = vand.u32 %v710, 2147483648
    %v936 = vor.u32 1.1754944e-38, %v935
    %v937 = vsel %vm934, %v936, %v932
    %v938 = vmul.f32 %v663, %v937
    %v939 = vrcp.pop %v713
    %v940 = vmul.f32 %v713, %v939
    %v941 = vsub.f32 1.0, %v940
    %v942 = vmul.f32 %v939, %v941
    %v943 = vadd.f32 %v939, %v942
    %vm944 = vweird.f32 %v713
    %vm945 = vweird.f32 %v939
    %vm946 = vmor %vm944, %vm945
    %v947 = vsel %vm946, %v939, %v943
    %v948 = vand.u32 2147483647, %v713
    %vm949 = vcmp.eq.f32.partialorder %v948, 8.507059e+37
    %v950 = vand.u32 %v713, 2147483648
    %v951 = vor.u32 1.1754944e-38, %v950
    %v952 = vsel %vm949, %v951, %v947
    %v953 = vmul.f32 %v665, %v952
    %v954 = vsel %vm569, %v728, 0.0
    %v955 = vsel %vm569, %v788, 0.0
    %v956 = vadd.f32 %v954, %v955
    %v957 = vsel %vm569, %v743, 0.0
    %v958 = vsel %vm569, %v803, 0.0
    %v959 = vadd.f32 %v957, %v958
    %v960 = vsel %vm569, %v758, 0.0
    %v961 = vsel %vm569, %v818, 0.0
    %v962 = vadd.f32 %v960, %v961
    %v963 = vsel %vm569, %v773, 0.0
    %v964 = vsel %vm569, %v833, 0.0
    %v965 = vadd.f32 %v963, %v964
    %v966 = vsel %vm569, %v848, 0.0
    %v967 = vsel %vm569, %v908, 0.0
    %v968 = vadd.f32 %v966, %v967
    %v969 = vsel %vm569, %v863, 0.0
    %v970 = vsel %vm569, %v923, 0.0
    %v971 = vadd.f32 %v969, %v970
    %v972 = vsel %vm569, %v878, 0.0
    %v973 = vsel %vm569, %v938, 0.0
    %v974 = vadd.f32 %v972, %v973
    %v975 = vsel %vm569, %v893, 0.0
    %v976 = vsel %vm569, %v953, 0.0
    %v977 = vadd.f32 %v975, %v976
    %v978 = vrcp.pop 2.0
    %v979 = vmul.f32 2.0, %v978
    %v980 = vsub.f32 1.0, %v979
    %v981 = vmul.f32 %v978, %v980
    %v982 = vadd.f32 %v978, %v981
    %vm983 = vweird.f32 %v978
    %v984 = vsel %vm983, %v978, %v982
    %v985 = vmul.f32 %v956, %v984
    %v986 = vmul.f32 %v959, %v984
    %v987 = vmul.f32 %v962, %v984
    %v988 = vmul.f32 %v965, %v984
    %v989 = vmul.f32 %v968, %v984
    %v990 = vmul.f32 %v971, %v984
    %v991 = vmul.f32 %v974, %v984
    %v992 = vmul.f32 %v977, %v984
    %993 = vst.msk [vmem:[#allocation8] sm:$0xf] %vm569, %v985
    %994 = vst.msk [vmem:[#allocation8 + $0x4] sm:$0xf] %vm569, %v986
    %995 = vst.msk [vmem:[#allocation8 + $0x8] sm:$0xf] %vm569, %v987
    %996 = vst.msk [vmem:[#allocation8 + $0xc] sm:$0xf] %vm569, %v988
    %997 = vst.msk [vmem:[#allocation8 + $0x10] sm:$0xf] %vm569, %v989
    %998 = vst.msk [vmem:[#allocation8 + $0x14] sm:$0xf] %vm569, %v990
    %999 = vst.msk [vmem:[#allocation8 + $0x18] sm:$0xf] %vm569, %v991
    %1000 = vst.msk [vmem:[#allocation8 + $0x1c] sm:$0xf] %vm569, %v992
    %v1001 = vld [vmem:[#allocation5] sm:$0xff]
    %v1002 = vld [vmem:[#allocation5 + $0x8] sm:$0xff]
    %v1004 = vsel %vm78, %v1001, 0
    %v1007 = vsel %vm78, %v1002, 0
    %1009 = vmatpush.msra.mxu0 0.0
    %1010 = vmatpush.msra.mxu0 0.0
    %1011 = vmatpush.msra.mxu0 0.0
    %1012 = vmatpush.msra.mxu0 0.0
    %1013 = vmatpush.msra.mxu0 0.0
    %1014 = vmatpush.msra.mxu0 0.0
    %1015 = vmatpush.msra.mxu0 0.0
    %1016 = vmatpush.msra.mxu0 0.0
    %1017 = vmatpush.msra.mxu0 0.0
    %1018 = vmatpush.msra.mxu0 0.0
    %1019 = vmatpush.msra.mxu0 0.0
    %1020 = vmatpush.msra.mxu0 0.0
    %1021 = vmatpush.msra.mxu0 %v71
    %1022 = vmatpush.msra.mxu0 %v70
    %1023 = vmatpush.msra.mxu0 %v69
    %1024 = vmatpush.msra.mxu0 %v68
    %1025 = vmatmul.f32.gmra.mxu0 %v1004
    %v1026 = vpop.f32.mrf.mxu0
    %v1027 = vadd.f32 %v76, %v1026
    %1028 = vmatmul.f32.gmra.mxu0 %v1007
    %v1029 = vpop.f32.mrf.mxu0
    %v1030 = vadd.f32 %v76, %v1029
    %1031 = vdwg.mxu0
    %v1033 = vrot.slane %v1027, 4
    %v1035 = vrot.slane %v1030, 4
    %1036 = vrot.lane.b32.xlu0 %v1027, 120
    %v1037 = vpop.permute.xlu0 %1036
    %1038 = vrot.lane.b32.xlu0 %v1033, 120
    %v1039 = vpop.permute.xlu0 %1038
    %1040 = vrot.lane.b32.xlu0 %v1030, 120
    %v1041 = vpop.permute.xlu0 %1040
    %1042 = vrot.lane.b32.xlu0 %v1035, 120
    %v1043 = vpop.permute.xlu0 %1042
    %1044 = vrot.lane.b32.xlu0 %v1027, 112
    %v1045 = vpop.permute.xlu0 %1044
    %1046 = vrot.lane.b32.xlu0 %v1033, 112
    %v1047 = vpop.permute.xlu0 %1046
    %1048 = vrot.lane.b32.xlu0 %v1030, 112
    %v1049 = vpop.permute.xlu0 %1048
    %1050 = vrot.lane.b32.xlu0 %v1035, 112
    %v1051 = vpop.permute.xlu0 %1050
    %1052 = vrot.lane.b32.xlu0 %v1027, 104
    %v1053 = vpop.permute.xlu0 %1052
    %1054 = vrot.lane.b32.xlu0 %v1033, 104
    %v1055 = vpop.permute.xlu0 %1054
    %1056 = vrot.lane.b32.xlu0 %v1030, 104
    %v1057 = vpop.permute.xlu0 %1056
    %1058 = vrot.lane.b32.xlu0 %v1035, 104
    %v1059 = vpop.permute.xlu0 %1058
    %1060 = vrot.lane.b32.xlu0 %v1027, 96
    %v1061 = vpop.permute.xlu0 %1060
    %v1062 = vsel %vm138, %v1027, 0
    %v1064 = vsel %vm138, %v1061, 0
    %1066 = vmatpush.xpose.msra.mxu0 0.0
    %1067 = vmatpush.xpose.msra.mxu0 0.0
    %1068 = vmatpush.xpose.msra.mxu0 0.0
    %1069 = vmatpush.xpose.msra.mxu0 0.0
    %1070 = vmatpush.xpose.msra.mxu0 0.0
    %1071 = vmatpush.xpose.msra.mxu0 0.0
    %1072 = vmatpush.xpose.msra.mxu0 0.0
    %1073 = vmatpush.xpose.msra.mxu0 0.0
    %1074 = vmatpush.xpose.msra.mxu0 0.0
    %1075 = vmatpush.xpose.msra.mxu0 0.0
    %1076 = vmatpush.xpose.msra.mxu0 0.0
    %1077 = vmatpush.xpose.msra.mxu0 0.0
    %1078 = vmatpush.xpose.msra.mxu0 0.0
    %1079 = vmatpush.xpose.msra.mxu0 0.0
    %1080 = vmatpush.xpose.msra.mxu0 0.0
    %1081 = vmatpush.xpose.msra.mxu0 %v1064
    %1082 = vmatmul.f32.gmra.mxu0 %v1062
    %v1083 = vpop.f32.mrf.mxu0
    %v1084 = vadd.f32 0.0, %v1083
    %1085 = vdwg.mxu0
    %1086 = vrot.lane.b32.xlu0 %v1037, 96
    %v1087 = vpop.permute.xlu0 %1086
    %v1088 = vsel %vm138, %v1037, 0
    %v1090 = vsel %vm138, %v1087, 0
    %1092 = vmatpush.xpose.msra.mxu0 0.0
    %1093 = vmatpush.xpose.msra.mxu0 0.0
    %1094 = vmatpush.xpose.msra.mxu0 0.0
    %1095 = vmatpush.xpose.msra.mxu0 0.0
    %1096 = vmatpush.xpose.msra.mxu0 0.0
    %1097 = vmatpush.xpose.msra.mxu0 0.0
    %1098 = vmatpush.xpose.msra.mxu0 0.0
    %1099 = vmatpush.xpose.msra.mxu0 0.0
    %1100 = vmatpush.xpose.msra.mxu0 0.0
    %1101 = vmatpush.xpose.msra.mxu0 0.0
    %1102 = vmatpush.xpose.msra.mxu0 0.0
    %1103 = vmatpush.xpose.msra.mxu0 0.0
    %1104 = vmatpush.xpose.msra.mxu0 0.0
    %1105 = vmatpush.xpose.msra.mxu0 0.0
    %1106 = vmatpush.xpose.msra.mxu0 0.0
    %1107 = vmatpush.xpose.msra.mxu0 %v1090
    %1108 = vmatmul.f32.gmra.mxu0 %v1088
    %v1109 = vpop.f32.mrf.mxu0
    %v1110 = vadd.f32 0.0, %v1109
    %1111 = vdwg.mxu0
    %1112 = vrot.lane.b32.xlu0 %v1045, 96
    %v1113 = vpop.permute.xlu0 %1112
    %v1114 = vsel %vm138, %v1045, 0
    %v1116 = vsel %vm138, %v1113, 0
    %1118 = vmatpush.xpose.msra.mxu0 0.0
    %1119 = vmatpush.xpose.msra.mxu0 0.0
    %1120 = vmatpush.xpose.msra.mxu0 0.0
    %1121 = vmatpush.xpose.msra.mxu0 0.0
    %1122 = vmatpush.xpose.msra.mxu0 0.0
    %1123 = vmatpush.xpose.msra.mxu0 0.0
    %1124 = vmatpush.xpose.msra.mxu0 0.0
    %1125 = vmatpush.xpose.msra.mxu0 0.0
    %1126 = vmatpush.xpose.msra.mxu0 0.0
    %1127 = vmatpush.xpose.msra.mxu0 0.0
    %1128 = vmatpush.xpose.msra.mxu0 0.0
    %1129 = vmatpush.xpose.msra.mxu0 0.0
    %1130 = vmatpush.xpose.msra.mxu0 0.0
    %1131 = vmatpush.xpose.msra.mxu0 0.0
    %1132 = vmatpush.xpose.msra.mxu0 0.0
    %1133 = vmatpush.xpose.msra.mxu0 %v1116
    %1134 = vmatmul.f32.gmra.mxu0 %v1114
    %v1135 = vpop.f32.mrf.mxu0
    %v1136 = vadd.f32 0.0, %v1135
    %1137 = vdwg.mxu0
    %1138 = vrot.lane.b32.xlu0 %v1053, 96
    %v1139 = vpop.permute.xlu0 %1138
    %v1140 = vsel %vm138, %v1053, 0
    %v1142 = vsel %vm138, %v1139, 0
    %1144 = vmatpush.xpose.msra.mxu0 0.0
    %1145 = vmatpush.xpose.msra.mxu0 0.0
    %1146 = vmatpush.xpose.msra.mxu0 0.0
    %1147 = vmatpush.xpose.msra.mxu0 0.0
    %1148 = vmatpush.xpose.msra.mxu0 0.0
    %1149 = vmatpush.xpose.msra.mxu0 0.0
    %1150 = vmatpush.xpose.msra.mxu0 0.0
    %1151 = vmatpush.xpose.msra.mxu0 0.0
    %1152 = vmatpush.xpose.msra.mxu0 0.0
    %1153 = vmatpush.xpose.msra.mxu0 0.0
    %1154 = vmatpush.xpose.msra.mxu0 0.0
    %1155 = vmatpush.xpose.msra.mxu0 0.0
    %1156 = vmatpush.xpose.msra.mxu0 0.0
    %1157 = vmatpush.xpose.msra.mxu0 0.0
    %1158 = vmatpush.xpose.msra.mxu0 0.0
    %1159 = vmatpush.xpose.msra.mxu0 %v1142
    %1160 = vmatmul.f32.gmra.mxu0 %v1140
    %v1161 = vpop.f32.mrf.mxu0
    %v1162 = vadd.f32 0.0, %v1161
    %1163 = vdwg.mxu0
    %1164 = vrot.lane.b32.xlu0 %v1033, 96
    %v1165 = vpop.permute.xlu0 %1164
    %v1166 = vsel %vm138, %v1033, 0
    %v1168 = vsel %vm138, %v1165, 0
    %1170 = vmatpush.xpose.msra.mxu0 0.0
    %1171 = vmatpush.xpose.msra.mxu0 0.0
    %1172 = vmatpush.xpose.msra.mxu0 0.0
    %1173 = vmatpush.xpose.msra.mxu0 0.0
    %1174 = vmatpush.xpose.msra.mxu0 0.0
    %1175 = vmatpush.xpose.msra.mxu0 0.0
    %1176 = vmatpush.xpose.msra.mxu0 0.0
    %1177 = vmatpush.xpose.msra.mxu0 0.0
    %1178 = vmatpush.xpose.msra.mxu0 0.0
    %1179 = vmatpush.xpose.msra.mxu0 0.0
    %1180 = vmatpush.xpose.msra.mxu0 0.0
    %1181 = vmatpush.xpose.msra.mxu0 0.0
    %1182 = vmatpush.xpose.msra.mxu0 0.0
    %1183 = vmatpush.xpose.msra.mxu0 0.0
    %1184 = vmatpush.xpose.msra.mxu0 0.0
    %1185 = vmatpush.xpose.msra.mxu0 %v1168
    %1186 = vmatmul.f32.gmra.mxu0 %v1166
    %v1187 = vpop.f32.mrf.mxu0
    %v1188 = vadd.f32 0.0, %v1187
    %1189 = vdwg.mxu0
    %1190 = vrot.lane.b32.xlu0 %v1039, 96
    %v1191 = vpop.permute.xlu0 %1190
    %v1192 = vsel %vm138, %v1039, 0
    %v1194 = vsel %vm138, %v1191, 0
    %1196 = vmatpush.xpose.msra.mxu0 0.0
    %1197 = vmatpush.xpose.msra.mxu0 0.0
    %1198 = vmatpush.xpose.msra.mxu0 0.0
    %1199 = vmatpush.xpose.msra.mxu0 0.0
    %1200 = vmatpush.xpose.msra.mxu0 0.0
    %1201 = vmatpush.xpose.msra.mxu0 0.0
    %1202 = vmatpush.xpose.msra.mxu0 0.0
    %1203 = vmatpush.xpose.msra.mxu0 0.0
    %1204 = vmatpush.xpose.msra.mxu0 0.0
    %1205 = vmatpush.xpose.msra.mxu0 0.0
    %1206 = vmatpush.xpose.msra.mxu0 0.0
    %1207 = vmatpush.xpose.msra.mxu0 0.0
    %1208 = vmatpush.xpose.msra.mxu0 0.0
    %1209 = vmatpush.xpose.msra.mxu0 0.0
    %1210 = vmatpush.xpose.msra.mxu0 0.0
    %1211 = vmatpush.xpose.msra.mxu0 %v1194
    %1212 = vmatmul.f32.gmra.mxu0 %v1192
    %v1213 = vpop.f32.mrf.mxu0
    %v1214 = vadd.f32 0.0, %v1213
    %1215 = vdwg.mxu0
    %1216 = vrot.lane.b32.xlu0 %v1047, 96
    %v1217 = vpop.permute.xlu0 %1216
    %v1218 = vsel %vm138, %v1047, 0
    %v1220 = vsel %vm138, %v1217, 0
    %1222 = vmatpush.xpose.msra.mxu0 0.0
    %1223 = vmatpush.xpose.msra.mxu0 0.0
    %1224 = vmatpush.xpose.msra.mxu0 0.0
    %1225 = vmatpush.xpose.msra.mxu0 0.0
    %1226 = vmatpush.xpose.msra.mxu0 0.0
    %1227 = vmatpush.xpose.msra.mxu0 0.0
    %1228 = vmatpush.xpose.msra.mxu0 0.0
    %1229 = vmatpush.xpose.msra.mxu0 0.0
    %1230 = vmatpush.xpose.msra.mxu0 0.0
    %1231 = vmatpush.xpose.msra.mxu0 0.0
    %1232 = vmatpush.xpose.msra.mxu0 0.0
    %1233 = vmatpush.xpose.msra.mxu0 0.0
    %1234 = vmatpush.xpose.msra.mxu0 0.0
    %1235 = vmatpush.xpose.msra.mxu0 0.0
    %1236 = vmatpush.xpose.msra.mxu0 0.0
    %1237 = vmatpush.xpose.msra.mxu0 %v1220
    %1238 = vmatmul.f32.gmra.mxu0 %v1218
    %v1239 = vpop.f32.mrf.mxu0
    %v1240 = vadd.f32 0.0, %v1239
    %1241 = vdwg.mxu0
    %1242 = vrot.lane.b32.xlu0 %v1055, 96
    %v1243 = vpop.permute.xlu0 %1242
    %v1244 = vsel %vm138, %v1055, 0
    %v1246 = vsel %vm138, %v1243, 0
    %1248 = vmatpush.xpose.msra.mxu0 0.0
    %1249 = vmatpush.xpose.msra.mxu0 0.0
    %1250 = vmatpush.xpose.msra.mxu0 0.0
    %1251 = vmatpush.xpose.msra.mxu0 0.0
    %1252 = vmatpush.xpose.msra.mxu0 0.0
    %1253 = vmatpush.xpose.msra.mxu0 0.0
    %1254 = vmatpush.xpose.msra.mxu0 0.0
    %1255 = vmatpush.xpose.msra.mxu0 0.0
    %1256 = vmatpush.xpose.msra.mxu0 0.0
    %1257 = vmatpush.xpose.msra.mxu0 0.0
    %1258 = vmatpush.xpose.msra.mxu0 0.0
    %1259 = vmatpush.xpose.msra.mxu0 0.0
    %1260 = vmatpush.xpose.msra.mxu0 0.0
    %1261 = vmatpush.xpose.msra.mxu0 0.0
    %1262 = vmatpush.xpose.msra.mxu0 0.0
    %1263 = vmatpush.xpose.msra.mxu0 %v1246
    %1264 = vmatmul.f32.gmra.mxu0 %v1244
    %v1265 = vpop.f32.mrf.mxu0
    %v1266 = vadd.f32 0.0, %v1265
    %1267 = vdwg.mxu0
    %1268 = vrot.lane.b32.xlu0 %v1030, 96
    %v1269 = vpop.permute.xlu0 %1268
    %v1270 = vsel %vm138, %v1030, 0
    %v1272 = vsel %vm138, %v1269, 0
    %1274 = vmatpush.xpose.msra.mxu0 0.0
    %1275 = vmatpush.xpose.msra.mxu0 0.0
    %1276 = vmatpush.xpose.msra.mxu0 0.0
    %1277 = vmatpush.xpose.msra.mxu0 0.0
    %1278 = vmatpush.xpose.msra.mxu0 0.0
    %1279 = vmatpush.xpose.msra.mxu0 0.0
    %1280 = vmatpush.xpose.msra.mxu0 0.0
    %1281 = vmatpush.xpose.msra.mxu0 0.0
    %1282 = vmatpush.xpose.msra.mxu0 0.0
    %1283 = vmatpush.xpose.msra.mxu0 0.0
    %1284 = vmatpush.xpose.msra.mxu0 0.0
    %1285 = vmatpush.xpose.msra.mxu0 0.0
    %1286 = vmatpush.xpose.msra.mxu0 0.0
    %1287 = vmatpush.xpose.msra.mxu0 0.0
    %1288 = vmatpush.xpose.msra.mxu0 0.0
    %1289 = vmatpush.xpose.msra.mxu0 %v1272
    %1290 = vmatmul.f32.gmra.mxu0 %v1270
    %v1291 = vpop.f32.mrf.mxu0
    %v1292 = vadd.f32 0.0, %v1291
    %1293 = vdwg.mxu0
    %1294 = vrot.lane.b32.xlu0 %v1041, 96
    %v1295 = vpop.permute.xlu0 %1294
    %v1296 = vsel %vm138, %v1041, 0
    %v1298 = vsel %vm138, %v1295, 0
    %1300 = vmatpush.xpose.msra.mxu0 0.0
    %1301 = vmatpush.xpose.msra.mxu0 0.0
    %1302 = vmatpush.xpose.msra.mxu0 0.0
    %1303 = vmatpush.xpose.msra.mxu0 0.0
    %1304 = vmatpush.xpose.msra.mxu0 0.0
    %1305 = vmatpush.xpose.msra.mxu0 0.0
    %1306 = vmatpush.xpose.msra.mxu0 0.0
    %1307 = vmatpush.xpose.msra.mxu0 0.0
    %1308 = vmatpush.xpose.msra.mxu0 0.0
    %1309 = vmatpush.xpose.msra.mxu0 0.0
    %1310 = vmatpush.xpose.msra.mxu0 0.0
    %1311 = vmatpush.xpose.msra.mxu0 0.0
    %1312 = vmatpush.xpose.msra.mxu0 0.0
    %1313 = vmatpush.xpose.msra.mxu0 0.0
    %1314 = vmatpush.xpose.msra.mxu0 0.0
    %1315 = vmatpush.xpose.msra.mxu0 %v1298
    %1316 = vmatmul.f32.gmra.mxu0 %v1296
    %v1317 = vpop.f32.mrf.mxu0
    %v1318 = vadd.f32 0.0, %v1317
    %1319 = vdwg.mxu0
    %1320 = vrot.lane.b32.xlu0 %v1049, 96
    %v1321 = vpop.permute.xlu0 %1320
    %v1322 = vsel %vm138, %v1049, 0
    %v1324 = vsel %vm138, %v1321, 0
    %1326 = vmatpush.xpose.msra.mxu0 0.0
    %1327 = vmatpush.xpose.msra.mxu0 0.0
    %1328 = vmatpush.xpose.msra.mxu0 0.0
    %1329 = vmatpush.xpose.msra.mxu0 0.0
    %1330 = vmatpush.xpose.msra.mxu0 0.0
    %1331 = vmatpush.xpose.msra.mxu0 0.0
    %1332 = vmatpush.xpose.msra.mxu0 0.0
    %1333 = vmatpush.xpose.msra.mxu0 0.0
    %1334 = vmatpush.xpose.msra.mxu0 0.0
    %1335 = vmatpush.xpose.msra.mxu0 0.0
    %1336 = vmatpush.xpose.msra.mxu0 0.0
    %1337 = vmatpush.xpose.msra.mxu0 0.0
    %1338 = vmatpush.xpose.msra.mxu0 0.0
    %1339 = vmatpush.xpose.msra.mxu0 0.0
    %1340 = vmatpush.xpose.msra.mxu0 0.0
    %1341 = vmatpush.xpose.msra.mxu0 %v1324
    %1342 = vmatmul.f32.gmra.mxu0 %v1322
    %v1343 = vpop.f32.mrf.mxu0
    %v1344 = vadd.f32 0.0, %v1343
    %1345 = vdwg.mxu0
    %1346 = vrot.lane.b32.xlu0 %v1057, 96
    %v1347 = vpop.permute.xlu0 %1346
    %v1348 = vsel %vm138, %v1057, 0
    %v1350 = vsel %vm138, %v1347, 0
    %1352 = vmatpush.xpose.msra.mxu0 0.0
    %1353 = vmatpush.xpose.msra.mxu0 0.0
    %1354 = vmatpush.xpose.msra.mxu0 0.0
    %1355 = vmatpush.xpose.msra.mxu0 0.0
    %1356 = vmatpush.xpose.msra.mxu0 0.0
    %1357 = vmatpush.xpose.msra.mxu0 0.0
    %1358 = vmatpush.xpose.msra.mxu0 0.0
    %1359 = vmatpush.xpose.msra.mxu0 0.0
    %1360 = vmatpush.xpose.msra.mxu0 0.0
    %1361 = vmatpush.xpose.msra.mxu0 0.0
    %1362 = vmatpush.xpose.msra.mxu0 0.0
    %1363 = vmatpush.xpose.msra.mxu0 0.0
    %1364 = vmatpush.xpose.msra.mxu0 0.0
    %1365 = vmatpush.xpose.msra.mxu0 0.0
    %1366 = vmatpush.xpose.msra.mxu0 0.0
    %1367 = vmatpush.xpose.msra.mxu0 %v1350
    %1368 = vmatmul.f32.gmra.mxu0 %v1348
    %v1369 = vpop.f32.mrf.mxu0
    %v1370 = vadd.f32 0.0, %v1369
    %1371 = vdwg.mxu0
    %1372 = vrot.lane.b32.xlu0 %v1035, 96
    %v1373 = vpop.permute.xlu0 %1372
    %v1374 = vsel %vm138, %v1035, 0
    %v1376 = vsel %vm138, %v1373, 0
    %1378 = vmatpush.xpose.msra.mxu0 0.0
    %1379 = vmatpush.xpose.msra.mxu0 0.0
    %1380 = vmatpush.xpose.msra.mxu0 0.0
    %1381 = vmatpush.xpose.msra.mxu0 0.0
    %1382 = vmatpush.xpose.msra.mxu0 0.0
    %1383 = vmatpush.xpose.msra.mxu0 0.0
    %1384 = vmatpush.xpose.msra.mxu0 0.0
    %1385 = vmatpush.xpose.msra.mxu0 0.0
    %1386 = vmatpush.xpose.msra.mxu0 0.0
    %1387 = vmatpush.xpose.msra.mxu0 0.0
    %1388 = vmatpush.xpose.msra.mxu0 0.0
    %1389 = vmatpush.xpose.msra.mxu0 0.0
    %1390 = vmatpush.xpose.msra.mxu0 0.0
    %1391 = vmatpush.xpose.msra.mxu0 0.0
    %1392 = vmatpush.xpose.msra.mxu0 0.0
    %1393 = vmatpush.xpose.msra.mxu0 %v1376
    %1394 = vmatmul.f32.gmra.mxu0 %v1374
    %v1395 = vpop.f32.mrf.mxu0
    %v1396 = vadd.f32 0.0, %v1395
    %1397 = vdwg.mxu0
    %1398 = vrot.lane.b32.xlu0 %v1043, 96
    %v1399 = vpop.permute.xlu0 %1398
    %v1400 = vsel %vm138, %v1043, 0
    %v1402 = vsel %vm138, %v1399, 0
    %1404 = vmatpush.xpose.msra.mxu0 0.0
    %1405 = vmatpush.xpose.msra.mxu0 0.0
    %1406 = vmatpush.xpose.msra.mxu0 0.0
    %1407 = vmatpush.xpose.msra.mxu0 0.0
    %1408 = vmatpush.xpose.msra.mxu0 0.0
    %1409 = vmatpush.xpose.msra.mxu0 0.0
    %1410 = vmatpush.xpose.msra.mxu0 0.0
    %1411 = vmatpush.xpose.msra.mxu0 0.0
    %1412 = vmatpush.xpose.msra.mxu0 0.0
    %1413 = vmatpush.xpose.msra.mxu0 0.0
    %1414 = vmatpush.xpose.msra.mxu0 0.0
    %1415 = vmatpush.xpose.msra.mxu0 0.0
    %1416 = vmatpush.xpose.msra.mxu0 0.0
    %1417 = vmatpush.xpose.msra.mxu0 0.0
    %1418 = vmatpush.xpose.msra.mxu0 0.0
    %1419 = vmatpush.xpose.msra.mxu0 %v1402
    %1420 = vmatmul.f32.gmra.mxu0 %v1400
    %v1421 = vpop.f32.mrf.mxu0
    %v1422 = vadd.f32 0.0, %v1421
    %1423 = vdwg.mxu0
    %1424 = vrot.lane.b32.xlu0 %v1051, 96
    %v1425 = vpop.permute.xlu0 %1424
    %v1426 = vsel %vm138, %v1051, 0
    %v1428 = vsel %vm138, %v1425, 0
    %1430 = vmatpush.xpose.msra.mxu0 0.0
    %1431 = vmatpush.xpose.msra.mxu0 0.0
    %1432 = vmatpush.xpose.msra.mxu0 0.0
    %1433 = vmatpush.xpose.msra.mxu0 0.0
    %1434 = vmatpush.xpose.msra.mxu0 0.0
    %1435 = vmatpush.xpose.msra.mxu0 0.0
    %1436 = vmatpush.xpose.msra.mxu0 0.0
    %1437 = vmatpush.xpose.msra.mxu0 0.0
    %1438 = vmatpush.xpose.msra.mxu0 0.0
    %1439 = vmatpush.xpose.msra.mxu0 0.0
    %1440 = vmatpush.xpose.msra.mxu0 0.0
    %1441 = vmatpush.xpose.msra.mxu0 0.0
    %1442 = vmatpush.xpose.msra.mxu0 0.0
    %1443 = vmatpush.xpose.msra.mxu0 0.0
    %1444 = vmatpush.xpose.msra.mxu0 0.0
    %1445 = vmatpush.xpose.msra.mxu0 %v1428
    %1446 = vmatmul.f32.gmra.mxu0 %v1426
    %v1447 = vpop.f32.mrf.mxu0
    %v1448 = vadd.f32 0.0, %v1447
    %1449 = vdwg.mxu0
    %1450 = vrot.lane.b32.xlu0 %v1059, 96
    %v1451 = vpop.permute.xlu0 %1450
    %v1452 = vsel %vm138, %v1059, 0
    %v1454 = vsel %vm138, %v1451, 0
    %1456 = vmatpush.xpose.msra.mxu0 0.0
    %1457 = vmatpush.xpose.msra.mxu0 0.0
    %1458 = vmatpush.xpose.msra.mxu0 0.0
    %1459 = vmatpush.xpose.msra.mxu0 0.0
    %1460 = vmatpush.xpose.msra.mxu0 0.0
    %1461 = vmatpush.xpose.msra.mxu0 0.0
    %1462 = vmatpush.xpose.msra.mxu0 0.0
    %1463 = vmatpush.xpose.msra.mxu0 0.0
    %1464 = vmatpush.xpose.msra.mxu0 0.0
    %1465 = vmatpush.xpose.msra.mxu0 0.0
    %1466 = vmatpush.xpose.msra.mxu0 0.0
    %1467 = vmatpush.xpose.msra.mxu0 0.0
    %1468 = vmatpush.xpose.msra.mxu0 0.0
    %1469 = vmatpush.xpose.msra.mxu0 0.0
    %1470 = vmatpush.xpose.msra.mxu0 0.0
    %1471 = vmatpush.xpose.msra.mxu0 %v1454
    %1472 = vmatmul.f32.gmra.mxu0 %v1452
    %v1473 = vpop.f32.mrf.mxu0
    %v1474 = vadd.f32 0.0, %v1473
    %1475 = vdwg.mxu0
    %v1476 = vmul.f32 %v1084, 0.35355338
    %v1477 = vmul.f32 %v1110, 0.35355338
    %v1478 = vmul.f32 %v1136, 0.35355338
    %v1479 = vmul.f32 %v1162, 0.35355338
    %v1480 = vmul.f32 %v1188, 0.35355338
    %v1481 = vmul.f32 %v1214, 0.35355338
    %v1482 = vmul.f32 %v1240, 0.35355338
    %v1483 = vmul.f32 %v1266, 0.35355338
    %v1484 = vmul.f32 %v1292, 0.35355338
    %v1485 = vmul.f32 %v1318, 0.35355338
    %v1486 = vmul.f32 %v1344, 0.35355338
    %v1487 = vmul.f32 %v1370, 0.35355338
    %v1488 = vmul.f32 %v1396, 0.35355338
    %v1489 = vmul.f32 %v1422, 0.35355338
    %v1490 = vmul.f32 %v1448, 0.35355338
    %v1491 = vmul.f32 %v1474, 0.35355338
    %v1492 = vsel %vm569, %v1476, -inf
    %1493 = vmax.xlane.f32.xlu0 %v1492
    %v1494 = vpop.xlane.xlu0 %1493
    %v1495 = vsel %vm569, %v1477, -inf
    %1496 = vmax.xlane.f32.xlu0 %v1495
    %v1497 = vpop.xlane.xlu0 %1496
    %v1498 = vsel %vm569, %v1478, -inf
    %1499 = vmax.xlane.f32.xlu0 %v1498
    %v1500 = vpop.xlane.xlu0 %1499
    %v1501 = vsel %vm569, %v1479, -inf
    %1502 = vmax.xlane.f32.xlu0 %v1501
    %v1503 = vpop.xlane.xlu0 %1502
    %v1504 = vsel %vm569, %v1480, -inf
    %1505 = vmax.xlane.f32.xlu0 %v1504
    %v1506 = vpop.xlane.xlu0 %1505
    %v1507 = vsel %vm569, %v1481, -inf
    %1508 = vmax.xlane.f32.xlu0 %v1507
    %v1509 = vpop.xlane.xlu0 %1508
    %v1510 = vsel %vm569, %v1482, -inf
    %1511 = vmax.xlane.f32.xlu0 %v1510
    %v1512 = vpop.xlane.xlu0 %1511
    %v1513 = vsel %vm569, %v1483, -inf
    %1514 = vmax.xlane.f32.xlu0 %v1513
    %v1515 = vpop.xlane.xlu0 %1514
    %v1516 = vsel %vm569, %v1484, -inf
    %1517 = vmax.xlane.f32.xlu0 %v1516
    %v1518 = vpop.xlane.xlu0 %1517
    %v1519 = vsel %vm569, %v1485, -inf
    %1520 = vmax.xlane.f32.xlu0 %v1519
    %v1521 = vpop.xlane.xlu0 %1520
    %v1522 = vsel %vm569, %v1486, -inf
    %1523 = vmax.xlane.f32.xlu0 %v1522
    %v1524 = vpop.xlane.xlu0 %1523
    %v1525 = vsel %vm569, %v1487, -inf
    %1526 = vmax.xlane.f32.xlu0 %v1525
    %v1527 = vpop.xlane.xlu0 %1526
    %v1528 = vsel %vm569, %v1488, -inf
    %1529 = vmax.xlane.f32.xlu0 %v1528
    %v1530 = vpop.xlane.xlu0 %1529
    %v1531 = vsel %vm569, %v1489, -inf
    %1532 = vmax.xlane.f32.xlu0 %v1531
    %v1533 = vpop.xlane.xlu0 %1532
    %v1534 = vsel %vm569, %v1490, -inf
    %1535 = vmax.xlane.f32.xlu0 %v1534
    %v1536 = vpop.xlane.xlu0 %1535
    %v1537 = vsel %vm569, %v1491, -inf
    %1538 = vmax.xlane.f32.xlu0 %v1537
    %v1539 = vpop.xlane.xlu0 %1538
    %v1540 = vsub.f32 %v1476, %v1494
    %v1541 = vsub.f32 %v1477, %v1497
    %v1542 = vsub.f32 %v1478, %v1500
    %v1543 = vsub.f32 %v1479, %v1503
    %v1544 = vsub.f32 %v1480, %v1506
    %v1545 = vsub.f32 %v1481, %v1509
    %v1546 = vsub.f32 %v1482, %v1512
    %v1547 = vsub.f32 %v1483, %v1515
    %v1548 = vsub.f32 %v1484, %v1518
    %v1549 = vsub.f32 %v1485, %v1521
    %v1550 = vsub.f32 %v1486, %v1524
    %v1551 = vsub.f32 %v1487, %v1527
    %v1552 = vsub.f32 %v1488, %v1530
    %v1553 = vsub.f32 %v1489, %v1533
    %v1554 = vsub.f32 %v1490, %v1536
    %v1555 = vsub.f32 %v1491, %v1539
    %v1556 = vmul.f32 %v1540, 1.442695
    %v1557 = vpow.pop %v1556
    %v1558 = vmul.f32 %v1541, 1.442695
    %v1559 = vpow.pop %v1558
    %v1560 = vmul.f32 %v1542, 1.442695
    %v1561 = vpow.pop %v1560
    %v1562 = vmul.f32 %v1543, 1.442695
    %v1563 = vpow.pop %v1562
    %v1564 = vmul.f32 %v1544, 1.442695
    %v1565 = vpow.pop %v1564
    %v1566 = vmul.f32 %v1545, 1.442695
    %v1567 = vpow.pop %v1566
    %v1568 = vmul.f32 %v1546, 1.442695
    %v1569 = vpow.pop %v1568
    %v1570 = vmul.f32 %v1547, 1.442695
    %v1571 = vpow.pop %v1570
    %v1572 = vmul.f32 %v1548, 1.442695
    %v1573 = vpow.pop %v1572
    %v1574 = vmul.f32 %v1549, 1.442695
    %v1575 = vpow.pop %v1574
    %v1576 = vmul.f32 %v1550, 1.442695
    %v1577 = vpow.pop %v1576
    %v1578 = vmul.f32 %v1551, 1.442695
    %v1579 = vpow.pop %v1578
    %v1580 = vmul.f32 %v1552, 1.442695
    %v1581 = vpow.pop %v1580
    %v1582 = vmul.f32 %v1553, 1.442695
    %v1583 = vpow.pop %v1582
    %v1584 = vmul.f32 %v1554, 1.442695
    %v1585 = vpow.pop %v1584
    %v1586 = vmul.f32 %v1555, 1.442695
    %v1587 = vpow.pop %v1586
    %v1588 = vsel %vm569, %v1557, 0.0
    %1589 = vadd.xlane.f32.xlu0 %v1588
    %v1590 = vpop.xlane.xlu0 %1589
    %v1591 = vsel %vm569, %v1559, 0.0
    %1592 = vadd.xlane.f32.xlu0 %v1591
    %v1593 = vpop.xlane.xlu0 %1592
    %v1594 = vsel %vm569, %v1561, 0.0
    %1595 = vadd.xlane.f32.xlu0 %v1594
    %v1596 = vpop.xlane.xlu0 %1595
    %v1597 = vsel %vm569, %v1563, 0.0
    %1598 = vadd.xlane.f32.xlu0 %v1597
    %v1599 = vpop.xlane.xlu0 %1598
    %v1600 = vsel %vm569, %v1565, 0.0
    %1601 = vadd.xlane.f32.xlu0 %v1600
    %v1602 = vpop.xlane.xlu0 %1601
    %v1603 = vsel %vm569, %v1567, 0.0
    %1604 = vadd.xlane.f32.xlu0 %v1603
    %v1605 = vpop.xlane.xlu0 %1604
    %v1606 = vsel %vm569, %v1569, 0.0
    %1607 = vadd.xlane.f32.xlu0 %v1606
    %v1608 = vpop.xlane.xlu0 %1607
    %v1609 = vsel %vm569, %v1571, 0.0
    %1610 = vadd.xlane.f32.xlu0 %v1609
    %v1611 = vpop.xlane.xlu0 %1610
    %v1612 = vsel %vm569, %v1573, 0.0
    %1613 = vadd.xlane.f32.xlu0 %v1612
    %v1614 = vpop.xlane.xlu0 %1613
    %v1615 = vsel %vm569, %v1575, 0.0
    %1616 = vadd.xlane.f32.xlu0 %v1615
    %v1617 = vpop.xlane.xlu0 %1616
    %v1618 = vsel %vm569, %v1577, 0.0
    %1619 = vadd.xlane.f32.xlu0 %v1618
    %v1620 = vpop.xlane.xlu0 %1619
    %v1621 = vsel %vm569, %v1579, 0.0
    %1622 = vadd.xlane.f32.xlu0 %v1621
    %v1623 = vpop.xlane.xlu0 %1622
    %v1624 = vsel %vm569, %v1581, 0.0
    %1625 = vadd.xlane.f32.xlu0 %v1624
    %v1626 = vpop.xlane.xlu0 %1625
    %v1627 = vsel %vm569, %v1583, 0.0
    %1628 = vadd.xlane.f32.xlu0 %v1627
    %v1629 = vpop.xlane.xlu0 %1628
    %v1630 = vsel %vm569, %v1585, 0.0
    %1631 = vadd.xlane.f32.xlu0 %v1630
    %v1632 = vpop.xlane.xlu0 %1631
    %v1633 = vsel %vm569, %v1587, 0.0
    %1634 = vadd.xlane.f32.xlu0 %v1633
    %v1635 = vpop.xlane.xlu0 %1634
    %v1636 = vrcp.pop %v1590
    %v1637 = vmul.f32 %v1590, %v1636
    %v1638 = vsub.f32 1.0, %v1637
    %v1639 = vmul.f32 %v1636, %v1638
    %v1640 = vadd.f32 %v1636, %v1639
    %vm1641 = vweird.f32 %v1590
    %vm1642 = vweird.f32 %v1636
    %vm1643 = vmor %vm1641, %vm1642
    %v1644 = vsel %vm1643, %v1636, %v1640
    %v1645 = vand.u32 2147483647, %v1590
    %vm1646 = vcmp.eq.f32.partialorder %v1645, 8.507059e+37
    %v1647 = vand.u32 %v1590, 2147483648
    %v1648 = vor.u32 1.1754944e-38, %v1647
    %v1649 = vsel %vm1646, %v1648, %v1644
    %v1650 = vmul.f32 %v1557, %v1649
    %v1651 = vrcp.pop %v1593
    %v1652 = vmul.f32 %v1593, %v1651
    %v1653 = vsub.f32 1.0, %v1652
    %v1654 = vmul.f32 %v1651, %v1653
    %v1655 = vadd.f32 %v1651, %v1654
    %vm1656 = vweird.f32 %v1593
    %vm1657 = vweird.f32 %v1651
    %vm1658 = vmor %vm1656, %vm1657
    %v1659 = vsel %vm1658, %v1651, %v1655
    %v1660 = vand.u32 2147483647, %v1593
    %vm1661 = vcmp.eq.f32.partialorder %v1660, 8.507059e+37
    %v1662 = vand.u32 %v1593, 2147483648
    %v1663 = vor.u32 1.1754944e-38, %v1662
    %v1664 = vsel %vm1661, %v1663, %v1659
    %v1665 = vmul.f32 %v1559, %v1664
    %v1666 = vrcp.pop %v1596
    %v1667 = vmul.f32 %v1596, %v1666
    %v1668 = vsub.f32 1.0, %v1667
    %v1669 = vmul.f32 %v1666, %v1668
    %v1670 = vadd.f32 %v1666, %v1669
    %vm1671 = vweird.f32 %v1596
    %vm1672 = vweird.f32 %v1666
    %vm1673 = vmor %vm1671, %vm1672
    %v1674 = vsel %vm1673, %v1666, %v1670
    %v1675 = vand.u32 2147483647, %v1596
    %vm1676 = vcmp.eq.f32.partialorder %v1675, 8.507059e+37
    %v1677 = vand.u32 %v1596, 2147483648
    %v1678 = vor.u32 1.1754944e-38, %v1677
    %v1679 = vsel %vm1676, %v1678, %v1674
    %v1680 = vmul.f32 %v1561, %v1679
    %v1681 = vrcp.pop %v1599
    %v1682 = vmul.f32 %v1599, %v1681
    %v1683 = vsub.f32 1.0, %v1682
    %v1684 = vmul.f32 %v1681, %v1683
    %v1685 = vadd.f32 %v1681, %v1684
    %vm1686 = vweird.f32 %v1599
    %vm1687 = vweird.f32 %v1681
    %vm1688 = vmor %vm1686, %vm1687
    %v1689 = vsel %vm1688, %v1681, %v1685
    %v1690 = vand.u32 2147483647, %v1599
    %vm1691 = vcmp.eq.f32.partialorder %v1690, 8.507059e+37
    %v1692 = vand.u32 %v1599, 2147483648
    %v1693 = vor.u32 1.1754944e-38, %v1692
    %v1694 = vsel %vm1691, %v1693, %v1689
    %v1695 = vmul.f32 %v1563, %v1694
    %v1696 = vrcp.pop %v1602
    %v1697 = vmul.f32 %v1602, %v1696
    %v1698 = vsub.f32 1.0, %v1697
    %v1699 = vmul.f32 %v1696, %v1698
    %v1700 = vadd.f32 %v1696, %v1699
    %vm1701 = vweird.f32 %v1602
    %vm1702 = vweird.f32 %v1696
    %vm1703 = vmor %vm1701, %vm1702
    %v1704 = vsel %vm1703, %v1696, %v1700
    %v1705 = vand.u32 2147483647, %v1602
    %vm1706 = vcmp.eq.f32.partialorder %v1705, 8.507059e+37
    %v1707 = vand.u32 %v1602, 2147483648
    %v1708 = vor.u32 1.1754944e-38, %v1707
    %v1709 = vsel %vm1706, %v1708, %v1704
    %v1710 = vmul.f32 %v1565, %v1709
    %v1711 = vrcp.pop %v1605
    %v1712 = vmul.f32 %v1605, %v1711
    %v1713 = vsub.f32 1.0, %v1712
    %v1714 = vmul.f32 %v1711, %v1713
    %v1715 = vadd.f32 %v1711, %v1714
    %vm1716 = vweird.f32 %v1605
    %vm1717 = vweird.f32 %v1711
    %vm1718 = vmor %vm1716, %vm1717
    %v1719 = vsel %vm1718, %v1711, %v1715
    %v1720 = vand.u32 2147483647, %v1605
    %vm1721 = vcmp.eq.f32.partialorder %v1720, 8.507059e+37
    %v1722 = vand.u32 %v1605, 2147483648
    %v1723 = vor.u32 1.1754944e-38, %v1722
    %v1724 = vsel %vm1721, %v1723, %v1719
    %v1725 = vmul.f32 %v1567, %v1724
    %v1726 = vrcp.pop %v1608
    %v1727 = vmul.f32 %v1608, %v1726
    %v1728 = vsub.f32 1.0, %v1727
    %v1729 = vmul.f32 %v1726, %v1728
    %v1730 = vadd.f32 %v1726, %v1729
    %vm1731 = vweird.f32 %v1608
    %vm1732 = vweird.f32 %v1726
    %vm1733 = vmor %vm1731, %vm1732
    %v1734 = vsel %vm1733, %v1726, %v1730
    %v1735 = vand.u32 2147483647, %v1608
    %vm1736 = vcmp.eq.f32.partialorder %v1735, 8.507059e+37
    %v1737 = vand.u32 %v1608, 2147483648
    %v1738 = vor.u32 1.1754944e-38, %v1737
    %v1739 = vsel %vm1736, %v1738, %v1734
    %v1740 = vmul.f32 %v1569, %v1739
    %v1741 = vrcp.pop %v1611
    %v1742 = vmul.f32 %v1611, %v1741
    %v1743 = vsub.f32 1.0, %v1742
    %v1744 = vmul.f32 %v1741, %v1743
    %v1745 = vadd.f32 %v1741, %v1744
    %vm1746 = vweird.f32 %v1611
    %vm1747 = vweird.f32 %v1741
    %vm1748 = vmor %vm1746, %vm1747
    %v1749 = vsel %vm1748, %v1741, %v1745
    %v1750 = vand.u32 2147483647, %v1611
    %vm1751 = vcmp.eq.f32.partialorder %v1750, 8.507059e+37
    %v1752 = vand.u32 %v1611, 2147483648
    %v1753 = vor.u32 1.1754944e-38, %v1752
    %v1754 = vsel %vm1751, %v1753, %v1749
    %v1755 = vmul.f32 %v1571, %v1754
    %v1756 = vrcp.pop %v1614
    %v1757 = vmul.f32 %v1614, %v1756
    %v1758 = vsub.f32 1.0, %v1757
    %v1759 = vmul.f32 %v1756, %v1758
    %v1760 = vadd.f32 %v1756, %v1759
    %vm1761 = vweird.f32 %v1614
    %vm1762 = vweird.f32 %v1756
    %vm1763 = vmor %vm1761, %vm1762
    %v1764 = vsel %vm1763, %v1756, %v1760
    %v1765 = vand.u32 2147483647, %v1614
    %vm1766 = vcmp.eq.f32.partialorder %v1765, 8.507059e+37
    %v1767 = vand.u32 %v1614, 2147483648
    %v1768 = vor.u32 1.1754944e-38, %v1767
    %v1769 = vsel %vm1766, %v1768, %v1764
    %v1770 = vmul.f32 %v1573, %v1769
    %v1771 = vrcp.pop %v1617
    %v1772 = vmul.f32 %v1617, %v1771
    %v1773 = vsub.f32 1.0, %v1772
    %v1774 = vmul.f32 %v1771, %v1773
    %v1775 = vadd.f32 %v1771, %v1774
    %vm1776 = vweird.f32 %v1617
    %vm1777 = vweird.f32 %v1771
    %vm1778 = vmor %vm1776, %vm1777
    %v1779 = vsel %vm1778, %v1771, %v1775
    %v1780 = vand.u32 2147483647, %v1617
    %vm1781 = vcmp.eq.f32.partialorder %v1780, 8.507059e+37
    %v1782 = vand.u32 %v1617, 2147483648
    %v1783 = vor.u32 1.1754944e-38, %v1782
    %v1784 = vsel %vm1781, %v1783, %v1779
    %v1785 = vmul.f32 %v1575, %v1784
    %v1786 = vrcp.pop %v1620
    %v1787 = vmul.f32 %v1620, %v1786
    %v1788 = vsub.f32 1.0, %v1787
    %v1789 = vmul.f32 %v1786, %v1788
    %v1790 = vadd.f32 %v1786, %v1789
    %vm1791 = vweird.f32 %v1620
    %vm1792 = vweird.f32 %v1786
    %vm1793 = vmor %vm1791, %vm1792
    %v1794 = vsel %vm1793, %v1786, %v1790
    %v1795 = vand.u32 2147483647, %v1620
    %vm1796 = vcmp.eq.f32.partialorder %v1795, 8.507059e+37
    %v1797 = vand.u32 %v1620, 2147483648
    %v1798 = vor.u32 1.1754944e-38, %v1797
    %v1799 = vsel %vm1796, %v1798, %v1794
    %v1800 = vmul.f32 %v1577, %v1799
    %v1801 = vrcp.pop %v1623
    %v1802 = vmul.f32 %v1623, %v1801
    %v1803 = vsub.f32 1.0, %v1802
    %v1804 = vmul.f32 %v1801, %v1803
    %v1805 = vadd.f32 %v1801, %v1804
    %vm1806 = vweird.f32 %v1623
    %vm1807 = vweird.f32 %v1801
    %vm1808 = vmor %vm1806, %vm1807
    %v1809 = vsel %vm1808, %v1801, %v1805
    %v1810 = vand.u32 2147483647, %v1623
    %vm1811 = vcmp.eq.f32.partialorder %v1810, 8.507059e+37
    %v1812 = vand.u32 %v1623, 2147483648
    %v1813 = vor.u32 1.1754944e-38, %v1812
    %v1814 = vsel %vm1811, %v1813, %v1809
    %v1815 = vmul.f32 %v1579, %v1814
    %v1816 = vrcp.pop %v1626
    %v1817 = vmul.f32 %v1626, %v1816
    %v1818 = vsub.f32 1.0, %v1817
    %v1819 = vmul.f32 %v1816, %v1818
    %v1820 = vadd.f32 %v1816, %v1819
    %vm1821 = vweird.f32 %v1626
    %vm1822 = vweird.f32 %v1816
    %vm1823 = vmor %vm1821, %vm1822
    %v1824 = vsel %vm1823, %v1816, %v1820
    %v1825 = vand.u32 2147483647, %v1626
    %vm1826 = vcmp.eq.f32.partialorder %v1825, 8.507059e+37
    %v1827 = vand.u32 %v1626, 2147483648
    %v1828 = vor.u32 1.1754944e-38, %v1827
    %v1829 = vsel %vm1826, %v1828, %v1824
    %v1830 = vmul.f32 %v1581, %v1829
    %v1831 = vrcp.pop %v1629
    %v1832 = vmul.f32 %v1629, %v1831
    %v1833 = vsub.f32 1.0, %v1832
    %v1834 = vmul.f32 %v1831, %v1833
    %v1835 = vadd.f32 %v1831, %v1834
    %vm1836 = vweird.f32 %v1629
    %vm1837 = vweird.f32 %v1831
    %vm1838 = vmor %vm1836, %vm1837
    %v1839 = vsel %vm1838, %v1831, %v1835
    %v1840 = vand.u32 2147483647, %v1629
    %vm1841 = vcmp.eq.f32.partialorder %v1840, 8.507059e+37
    %v1842 = vand.u32 %v1629, 2147483648
    %v1843 = vor.u32 1.1754944e-38, %v1842
    %v1844 = vsel %vm1841, %v1843, %v1839
    %v1845 = vmul.f32 %v1583, %v1844
    %v1846 = vrcp.pop %v1632
    %v1847 = vmul.f32 %v1632, %v1846
    %v1848 = vsub.f32 1.0, %v1847
    %v1849 = vmul.f32 %v1846, %v1848
    %v1850 = vadd.f32 %v1846, %v1849
    %vm1851 = vweird.f32 %v1632
    %vm1852 = vweird.f32 %v1846
    %vm1853 = vmor %vm1851, %vm1852
    %v1854 = vsel %vm1853, %v1846, %v1850
    %v1855 = vand.u32 2147483647, %v1632
    %vm1856 = vcmp.eq.f32.partialorder %v1855, 8.507059e+37
    %v1857 = vand.u32 %v1632, 2147483648
    %v1858 = vor.u32 1.1754944e-38, %v1857
    %v1859 = vsel %vm1856, %v1858, %v1854
    %v1860 = vmul.f32 %v1585, %v1859
    %v1861 = vrcp.pop %v1635
    %v1862 = vmul.f32 %v1635, %v1861
    %v1863 = vsub.f32 1.0, %v1862
    %v1864 = vmul.f32 %v1861, %v1863
    %v1865 = vadd.f32 %v1861, %v1864
    %vm1866 = vweird.f32 %v1635
    %vm1867 = vweird.f32 %v1861
    %vm1868 = vmor %vm1866, %vm1867
    %v1869 = vsel %vm1868, %v1861, %v1865
    %v1870 = vand.u32 2147483647, %v1635
    %vm1871 = vcmp.eq.f32.partialorder %v1870, 8.507059e+37
    %v1872 = vand.u32 %v1635, 2147483648
    %v1873 = vor.u32 1.1754944e-38, %v1872
    %v1874 = vsel %vm1871, %v1873, %v1869
    %v1875 = vmul.f32 %v1587, %v1874
    %v1876 = vsel %vm569, %v1650, 0.0
    %v1877 = vsel %vm569, %v1710, 0.0
    %v1878 = vadd.f32 %v1876, %v1877
    %v1879 = vsel %vm569, %v1665, 0.0
    %v1880 = vsel %vm569, %v1725, 0.0
    %v1881 = vadd.f32 %v1879, %v1880
    %v1882 = vsel %vm569, %v1680, 0.0
    %v1883 = vsel %vm569, %v1740, 0.0
    %v1884 = vadd.f32 %v1882, %v1883
    %v1885 = vsel %vm569, %v1695, 0.0
    %v1886 = vsel %vm569, %v1755, 0.0
    %v1887 = vadd.f32 %v1885, %v1886
    %v1888 = vsel %vm569, %v1770, 0.0
    %v1889 = vsel %vm569, %v1830, 0.0
    %v1890 = vadd.f32 %v1888, %v1889
    %v1891 = vsel %vm569, %v1785, 0.0
    %v1892 = vsel %vm569, %v1845, 0.0
    %v1893 = vadd.f32 %v1891, %v1892
    %v1894 = vsel %vm569, %v1800, 0.0
    %v1895 = vsel %vm569, %v1860, 0.0
    %v1896 = vadd.f32 %v1894, %v1895
    %v1897 = vsel %vm569, %v1815, 0.0
    %v1898 = vsel %vm569, %v1875, 0.0
    %v1899 = vadd.f32 %v1897, %v1898
    %v1900 = vmul.f32 %v1878, %v984
    %v1901 = vmul.f32 %v1881, %v984
    %v1902 = vmul.f32 %v1884, %v984
    %v1903 = vmul.f32 %v1887, %v984
    %v1904 = vmul.f32 %v1890, %v984
    %v1905 = vmul.f32 %v1893, %v984
    %v1906 = vmul.f32 %v1896, %v984
    %v1907 = vmul.f32 %v1899, %v984
    %1908 = vst.msk [vmem:[#allocation9] sm:$0xf] %vm569, %v1900
    %1909 = vst.msk [vmem:[#allocation9 + $0x4] sm:$0xf] %vm569, %v1901
    %1910 = vst.msk [vmem:[#allocation9 + $0x8] sm:$0xf] %vm569, %v1902
    %1911 = vst.msk [vmem:[#allocation9 + $0xc] sm:$0xf] %vm569, %v1903
    %1912 = vst.msk [vmem:[#allocation9 + $0x10] sm:$0xf] %vm569, %v1904
    %1913 = vst.msk [vmem:[#allocation9 + $0x14] sm:$0xf] %vm569, %v1905
    %1914 = vst.msk [vmem:[#allocation9 + $0x18] sm:$0xf] %vm569, %v1906
    %1915 = vst.msk [vmem:[#allocation9 + $0x1c] sm:$0xf] %vm569, %v1907
    // Predicated region
    $region30: #{tpu_custom_call.1} parent=1 // pred_check
      _
    $region31: #{tpu_custom_call.1} parent=1 // pred_check_branch
      %1917 = sbr.rel (0) target = $region33
    $region32: #{tpu_custom_call.1} parent=1 // pred_region
      %1919 = vsyncadd [#allocation4], 0
      %s1920 = sshll.u32 [#allocation8], 4
      %s1921 = int_to_ptr.vmem [resolvable:$true] %s1920
      %s1922 = sshll.u32 %s4, 4
      %s1923 = int_to_ptr.hbm [resolvable:$true] %s1922
      %1928 = dma.vmem_to_hbm [thread:$0]  %s1921, 512, %s1923, [#allocation4], 64, 64, 4
    $region33: #{tpu_custom_call.1} parent=1 // pred_fallthru
      _
    // Predicated region
    $region34: #{tpu_custom_call.1} parent=1 // pred_check
      _
    $region35: #{tpu_custom_call.1} parent=1 // pred_check_branch
      %1930 = sbr.rel (0) target = $region37
    $region36: #{tpu_custom_call.1} parent=1 // pred_region
      %1932 = vsyncadd [#allocation10], 0
      %s1933 = sshll.u32 [#allocation9], 4
      %s1934 = int_to_ptr.vmem [resolvable:$true] %s1933
      %s1935 = sshll.u32 %s5, 4
      %s1936 = int_to_ptr.hbm [resolvable:$true] %s1935
      %1941 = dma.vmem_to_hbm [thread:$0]  %s1934, 512, %s1936, [#allocation10], 64, 64, 4
    $region37: #{tpu_custom_call.1} parent=1 // pred_fallthru
      _
    // Predicated region
    $region38: #{tpu_custom_call.1} parent=1 // pred_check
      _
    $region39: #{tpu_custom_call.1} parent=1 // pred_check_branch
      %1943 = sbr.rel (0) target = $region41
    $region40: #{tpu_custom_call.1} parent=1 // pred_region
      %1945 = dma.done [#allocation4], 512
    $region41: #{tpu_custom_call.1} parent=1 // pred_fallthru
      _
    // Predicated region
    $region42: #{tpu_custom_call.1} parent=1 // pred_check
      _
    $region43: #{tpu_custom_call.1} parent=1 // pred_check_branch
      %1947 = sbr.rel (0) target = $region45
    $region44: #{tpu_custom_call.1} parent=1 // pred_region
      %1949 = dma.done [#allocation10], 512
    $region45: #{tpu_custom_call.1} parent=1 // pred_fallthru
      _
    %1950 = vsyncpa [#allocation3], 1
    %1951 = vsyncpa [#allocation6], 1
    %1952 = vsyncpa [#allocation4], 1
    %1953 = vsyncpa [#allocation10], 1

</llo_original>
